<compile_context>
chip_gen: v5e
topology: v5e:2x2
jax: 0.10.0
libtpu: 0.0.40
codegen_flags: <defaults>
</compile_context>

<pallas_src>
import functools

import jax
import jax.numpy as jnp
from jax.experimental import pallas as pl
from jax.experimental.pallas import tpu as pltpu

EPS = 1e-5                     # BatchNorm / InPlaceABNSync default eps
SLOPE = 0.01                   # InPlaceABNSync default LeakyReLU slope
VMEM_LIMIT = 32 * 1024 * 1024
CONV_SCRATCH_BUDGET = 8 * 1024 * 1024   # VMEM allowed for the resident conv output


def _round_up(x, m):
    return (x + m - 1) // m * m


# ---------------------------------------------------------------------------
# Single fused kernel.  Grid = (pass, M tiles); pass 0 = GEMM + bias + fused BN
# statistics (conv output kept in VMEM scratch), pass 1 = scale/shift + LReLU.
# ---------------------------------------------------------------------------
def _fused_down_block_kernel(x_ref, w_ref, b_ref, g_ref, beta_ref,
                             o_ref, conv_buf, s_buf, q_buf,
                             *, tm, m_valid, inv_m):
    p = pl.program_id(0)          # 0: GEMM + stats, 1: BN apply
    i = pl.program_id(1)          # M tile
    nm = pl.num_programs(1)
    off = pl.multiple_of(i * tm, tm)

    @pl.when(p == 0)
    def _gemm_and_stats():
        y = jnp.dot(x_ref[...], w_ref[...],
                    preferred_element_type=jnp.float32) + b_ref[...]
        conv_buf[pl.ds(off, tm), :] = y

        # Rows that only exist because M was padded up to a tile multiple must
        # not pollute the batch statistics.
        row = off + jax.lax.broadcasted_iota(jnp.int32, y.shape, 0)
        ym = jnp.where(row < m_valid, y, 0.0)

        @pl.when(i == 0)
        def _():
            s_buf[...] = jnp.zeros_like(s_buf)
            q_buf[...] = jnp.zeros_like(q_buf)

        s_buf[...] += jnp.sum(ym, axis=0, keepdims=True)
        q_buf[...] += jnp.sum(ym * ym, axis=0, keepdims=True)

        # After the last tile, fold the statistics into scale/shift in-kernel.
        @pl.when(i == nm - 1)
        def _finalize_stats():
            mean = s_buf[...] * inv_m
            var = jnp.maximum(q_buf[...] * inv_m - mean * mean, 0.0)
            scale = g_ref[...] * jax.lax.rsqrt(var + EPS)
            shift = beta_ref[...] - mean * scale
            s_buf[...] = scale          # reuse the stats buffers for the affine
            q_buf[...] = shift

    @pl.when(p == 1)
    def _apply():
        y = conv_buf[pl.ds(off, tm), :]
        z = y * s_buf[...] + q_buf[...]
        o_ref[...] = jnp.where(z >= 0.0, z, SLOPE * z).astype(o_ref.dtype)


def _fused_conv_bn_lrelu(X, Wm, bias, gamma, beta):
    """Fully fused:  out = LeakyReLU( BN_batch( X @ Wm + bias ) ).
    X:(M,KC) bf16, Wm:(KC,Cout) bf16; bias/gamma/beta:(Cout,) f32."""
    M, KC = X.shape
    Cout = Wm.shape[1]

    TM = min(512, _round_up(M, 8))
    Mp = _round_up(M, TM)
    Coutp = _round_up(Cout, 128)            # lane-dense (unmasked) stores
    KCp = _round_up(KC, 128)                # full-K contraction per tile

    # The conv output lives in VMEM for the whole call.
    # TODO(synk): for activations larger than the VMEM budget, spill the conv
    # output to HBM (two-kernel split) instead of holding it resident.
    assert Mp * Coutp * 4 <= CONV_SCRATCH_BUDGET, (Mp, Coutp)

    Xp = jnp.pad(X, ((0, Mp - M), (0, KCp - KC)))
    Wp = jnp.pad(Wm, ((0, KCp - KC), (0, Coutp - Cout)))
    bp = jnp.pad(bias, (0, Coutp - Cout)).reshape(1, Coutp).astype(jnp.float32)
    gp = jnp.pad(gamma, (0, Coutp - Cout),
                 constant_values=1.0).reshape(1, Coutp).astype(jnp.float32)
    betap = jnp.pad(beta, (0, Coutp - Cout)).reshape(1, Coutp).astype(jnp.float32)

    nm = Mp // TM
    kernel = functools.partial(_fused_down_block_kernel,
                               tm=TM, m_valid=M, inv_m=1.0 / M)

    out = pl.pallas_call(
        kernel,
        out_shape=jax.ShapeDtypeStruct((Mp, Coutp), jnp.float32),
        grid_spec=pltpu.PrefetchScalarGridSpec(
            num_scalar_prefetch=0,
            grid=(2, nm),                               # (pass, M tile)
            in_specs=[
                # X: real tiles during pass 0; pinned to block (0,0) in pass 1
                # so the apply pass issues no fresh HBM reads.
                pl.BlockSpec((TM, KCp), lambda p, i: (i * (1 - p), 0)),
                pl.BlockSpec((KCp, Coutp), lambda p, i: (0, 0)),
                pl.BlockSpec((1, Coutp), lambda p, i: (0, 0)),
                pl.BlockSpec((1, Coutp), lambda p, i: (0, 0)),
                pl.BlockSpec((1, Coutp), lambda p, i: (0, 0)),
            ],
            # Output block only advances during pass 1 -> no writebacks of
            # not-yet-computed data during pass 0.
            out_specs=pl.BlockSpec((TM, Coutp), lambda p, i: (i * p, 0)),
            scratch_shapes=[
                pltpu.VMEM((Mp, Coutp), jnp.float32),   # resident conv output
                pltpu.VMEM((1, Coutp), jnp.float32),    # sum   -> scale
                pltpu.VMEM((1, Coutp), jnp.float32),    # sumsq -> shift
            ],
        ),
        compiler_params=pltpu.CompilerParams(
            dimension_semantics=("arbitrary", "arbitrary"),
            vmem_limit_bytes=VMEM_LIMIT),
    )(Xp, Wp, bp, gp, betap)
    return out, M, Cout


# ---------------------------------------------------------------------------
# DownBlockBN forward
# ---------------------------------------------------------------------------
def down_block_bn_forward(x_ncdhw, params, kernel_size, stride, padding):
    kD, kH, kW = kernel_size
    sd, sh, sw = stride
    pd, ph, pw = padding

    x = jnp.transpose(x_ncdhw, (0, 2, 3, 4, 1))            # NDHWC
    N, D, H, W, Cin = x.shape
    xp = jnp.pad(x, ((0, 0), (pd, pd), (ph, ph), (pw, pw), (0, 0)))
    Do = (D + 2 * pd - kD) // sd + 1
    Ho = (H + 2 * ph - kH) // sh + 1
    Wo = (W + 2 * pw - kW) // sw + 1
    M = N * Do * Ho * Wo
    Cout = params['b'].shape[0]

    # Patch matrix (thin strided-slice glue), bf16 operands for the MXU.
    cols = []
    for a in range(kD):
        for c in range(kH):
            for e in range(kW):
                sl = xp[:,
                        a: a + (Do - 1) * sd + 1: sd,
                        c: c + (Ho - 1) * sh + 1: sh,
                        e: e + (Wo - 1) * sw + 1: sw, :]
                cols.append(sl.reshape(M, Cin))
    X = jnp.concatenate(cols, axis=1).astype(jnp.bfloat16)       # (M, kvol*Cin)
    Wm = params['w'].reshape(kD * kH * kW * Cin, Cout).astype(jnp.bfloat16)

    out, Mv, Cv = _fused_conv_bn_lrelu(X, Wm, params['b'],
                                       params['g'], params['bn_b'])

    y = out[:Mv, :Cv].reshape(N, Do, Ho, Wo, Cout)
    return jnp.transpose(y, (0, 4, 1, 2, 3))                # back to NCDHW

# TODO(synk): InPlaceABNSync's cross-replica statistic synchronization and
# running-mean/var buffer updates are not modeled (single-device forward only).


def build_params(key, cin, cout, kernel_size):
    kD, kH, kW = kernel_size
    fan_in = kD * kH * kW * cin
    kw_, kb_ = jax.random.split(key)
    bound = 1.0 / jnp.sqrt(float(fan_in))
    w = jax.random.uniform(kw_, (kD, kH, kW, cin, cout), jnp.float32,
                           -bound, bound)
    b = jax.random.uniform(kb_, (cout,), jnp.float32, -bound, bound)
    return {'w': w, 'b': b,
            'g': jnp.ones((cout,), jnp.float32),
            'bn_b': jnp.zeros((cout,), jnp.float32)}


if __name__ == "__main__":
    key = jax.random.PRNGKey(0)
    pkey, xkey = jax.random.split(key)

    IN_PLANES, OUT_PLANES = 4, 32
    KS, STRIDE, PAD = (4, 4, 4), (2, 2, 2), (1, 1, 1)

    params = build_params(pkey, IN_PLANES, OUT_PLANES, KS)
    # PyTorch-style input: NCDHW = (2, 4, 16, 16, 16)
    x = jax.random.normal(xkey, (2, IN_PLANES, 16, 16, 16), jnp.float32)

    fwd = jax.jit(functools.partial(down_block_bn_forward, params=params,
                                    kernel_size=KS, stride=STRIDE, padding=PAD))
    out = jax.block_until_ready(fwd(x))

    assert out.shape == (2, OUT_PLANES, 8, 8, 8), out.shape
    assert bool(jnp.all(jnp.isfinite(out)))
    print("KERNEL_OK")
</pallas_src>

<mosaic_0001>
module attributes {stable_mosaic.version = 11 : i64} {
  func.func @_fused_down_block_kernel(%arg0: i32, %arg1: i32, %arg2: memref<512x256xbf16, #tpu.memory_space<vmem>>, %arg3: memref<256x128xbf16, #tpu.memory_space<vmem>>, %arg4: memref<1x128xf32, #tpu.memory_space<vmem>>, %arg5: memref<1x128xf32, #tpu.memory_space<vmem>>, %arg6: memref<1x128xf32, #tpu.memory_space<vmem>>, %arg7: memref<512x128xf32, #tpu.memory_space<vmem>>, %arg8: memref<1024x128xf32, #tpu.memory_space<vmem>>, %arg9: memref<1x128xf32, #tpu.memory_space<vmem>>, %arg10: memref<1x128xf32, #tpu.memory_space<vmem>>) attributes {dimension_semantics = [#tpu.dimension_semantics<arbitrary>, #tpu.dimension_semantics<arbitrary>], iteration_bounds = array<i64: 2, 2>, scalar_prefetch = 0 : i64, scratch_operands = 3 : i64, tpu.core_type = #tpu.core_type<tc>, window_params = [{transform_indices = @transform_0, window_bounds = array<i64: 512, 256>}, {pipeline_mode = #tpu.pipeline_mode<synchronous>, transform_indices = @transform_1, window_bounds = array<i64: 256, 128>}, {pipeline_mode = #tpu.pipeline_mode<synchronous>, transform_indices = @transform_2, window_bounds = array<i64: 1, 128>}, {pipeline_mode = #tpu.pipeline_mode<synchronous>, transform_indices = @transform_3, window_bounds = array<i64: 1, 128>}, {pipeline_mode = #tpu.pipeline_mode<synchronous>, transform_indices = @transform_4, window_bounds = array<i64: 1, 128>}, {transform_indices = @transform_5, window_bounds = array<i64: 512, 128>}]} {
    %c512_i32 = arith.constant 512 : i32
    %0 = arith.muli %arg1, %c512_i32 : i32
    %1 = tpu.assume_multiple %0, 512 : i32
    %c0_i32 = arith.constant 0 : i32
    %2 = arith.cmpi eq, %arg0, %c0_i32 : i32
    %3 = arith.extui %2 : i1 to i32
    %c0_i32_0 = arith.constant 0 : i32
    %4 = arith.cmpi ne, %3, %c0_i32_0 : i32
    scf.if %4 {
      %c0 = arith.constant 0 : index
      %c0_2 = arith.constant 0 : index
      %8 = vector.load %arg2[%c0, %c0_2] : memref<512x256xbf16, #tpu.memory_space<vmem>>, vector<512x256xbf16>
      %c0_3 = arith.constant 0 : index
      %c0_4 = arith.constant 0 : index
      %9 = vector.load %arg3[%c0_3, %c0_4] : memref<256x128xbf16, #tpu.memory_space<vmem>>, vector<256x128xbf16>
      %cst = arith.constant dense<0.000000e+00> : vector<512x128xf32>
      %10 = tpu.matmul %8, %9, %cst {dimension_numbers = #tpu.dot_dimension_numbers<[1], [0], [0], [1], [0, 0, 1, 1], [], []>} : vector<512x256xbf16>, vector<256x128xbf16>, vector<512x128xf32> -> vector<512x128xf32>
      %c0_5 = arith.constant 0 : index
      %c0_6 = arith.constant 0 : index
      %11 = vector.load %arg4[%c0_5, %c0_6] : memref<1x128xf32, #tpu.memory_space<vmem>>, vector<1x128xf32>
      %12 = vector.broadcast %11 : vector<1x128xf32> to vector<512x128xf32>
      %13 = arith.addf %10, %12 : vector<512x128xf32>
      %14 = arith.index_cast %1 : i32 to index
      %c0_7 = arith.constant 0 : index
      %15 = vector.load %arg8[%14, %c0_7] : memref<1024x128xf32, #tpu.memory_space<vmem>>, vector<512x128xf32>
      tpu.vector_store %arg8[%14, %c0_7], %13 {strides = array<i32>} : memref<1024x128xf32, #tpu.memory_space<vmem>>, vector<512x128xf32>,
      %16 = tpu.iota {dimensions = array<i32: 0>} : vector<512x128xi32>
      %17 = vector.broadcast %1 : i32 to vector<512x128xi32>
      %18 = arith.addi %17, %16 : vector<512x128xi32>
      %c1024_i32 = arith.constant 1024 : i32
      %19 = vector.broadcast %c1024_i32 : i32 to vector<512x128xi32>
      %20 = arith.cmpi slt, %18, %19 : vector<512x128xi32>
      %cst_8 = arith.constant 0.000000e+00 : f32
      %21 = vector.broadcast %cst_8 : f32 to vector<512x128xf32>
      %22 = arith.select %20, %13, %21 : vector<512x128xi1>, vector<512x128xf32>
      %c0_i32_9 = arith.constant 0 : i32
      %23 = arith.cmpi eq, %arg1, %c0_i32_9 : i32
      %24 = arith.extui %23 : i1 to i32
      %c0_i32_10 = arith.constant 0 : i32
      %25 = arith.cmpi ne, %24, %c0_i32_10 : i32
      scf.if %25 {
        %cst_23 = arith.constant 0.000000e+00 : f32
        %40 = vector.broadcast %cst_23 : f32 to vector<1x128xf32>
        %c0_24 = arith.constant 0 : index
        %c0_25 = arith.constant 0 : index
        %41 = vector.load %arg9[%c0_24, %c0_25] : memref<1x128xf32, #tpu.memory_space<vmem>>, vector<1x128xf32>
        tpu.vector_store %arg9[%c0_24, %c0_25], %40 {strides = array<i32>} : memref<1x128xf32, #tpu.memory_space<vmem>>, vector<1x128xf32>,
        %cst_26 = arith.constant 0.000000e+00 : f32
        %42 = vector.broadcast %cst_26 : f32 to vector<1x128xf32>
        %c0_27 = arith.constant 0 : index
        %c0_28 = arith.constant 0 : index
        %43 = vector.load %arg10[%c0_27, %c0_28] : memref<1x128xf32, #tpu.memory_space<vmem>>, vector<1x128xf32>
        tpu.vector_store %arg10[%c0_27, %c0_28], %42 {strides = array<i32>} : memref<1x128xf32, #tpu.memory_space<vmem>>, vector<1x128xf32>,
      } else {
      }
      %c0_11 = arith.constant 0 : index
      %c0_12 = arith.constant 0 : index
      %26 = vector.load %arg9[%c0_11, %c0_12] : memref<1x128xf32, #tpu.memory_space<vmem>>, vector<1x128xf32>
      %cst_13 = arith.constant dense<0.000000e+00> : vector<128xf32>
      %27 = vector.multi_reduction <add>, %22, %cst_13 [0] : vector<512x128xf32> to vector<128xf32>
      %28 = vector.shape_cast %27 : vector<128xf32> to vector<1x128xf32>
      %29 = arith.addf %26, %28 : vector<1x128xf32>
      %c0_14 = arith.constant 0 : index
      %c0_15 = arith.constant 0 : index
      %30 = vector.load %arg9[%c0_14, %c0_15] : memref<1x128xf32, #tpu.memory_space<vmem>>, vector<1x128xf32>
      tpu.vector_store %arg9[%c0_14, %c0_15], %29 {strides = array<i32>} : memref<1x128xf32, #tpu.memory_space<vmem>>, vector<1x128xf32>,
      %c0_16 = arith.constant 0 : index
      %c0_17 = arith.constant 0 : index
      %31 = vector.load %arg10[%c0_16, %c0_17] : memref<1x128xf32, #tpu.memory_space<vmem>>, vector<1x128xf32>
      %32 = arith.mulf %22, %22 : vector<512x128xf32>
      %cst_18 = arith.constant dense<0.000000e+00> : vector<128xf32>
      %33 = vector.multi_reduction <add>, %32, %cst_18 [0] : vector<512x128xf32> to vector<128xf32>
      %34 = vector.shape_cast %33 : vector<128xf32> to vector<1x128xf32>
      %35 = arith.addf %31, %34 : vector<1x128xf32>
      %c0_19 = arith.constant 0 : index
      %c0_20 = arith.constant 0 : index
      %36 = vector.load %arg10[%c0_19, %c0_20] : memref<1x128xf32, #tpu.memory_space<vmem>>, vector<1x128xf32>
      tpu.vector_store %arg10[%c0_19, %c0_20], %35 {strides = array<i32>} : memref<1x128xf32, #tpu.memory_space<vmem>>, vector<1x128xf32>,
      %c1_i32_21 = arith.constant 1 : i32
      %37 = arith.cmpi eq, %arg1, %c1_i32_21 : i32
      %38 = arith.extui %37 : i1 to i32
      %c0_i32_22 = arith.constant 0 : i32
      %39 = arith.cmpi ne, %38, %c0_i32_22 : i32
      scf.if %39 {
        %c0_23 = arith.constant 0 : index
        %c0_24 = arith.constant 0 : index
        %40 = vector.load %arg9[%c0_23, %c0_24] : memref<1x128xf32, #tpu.memory_space<vmem>>, vector<1x128xf32>
        %cst_25 = arith.constant 9.765625E-4 : f32
        %41 = vector.broadcast %cst_25 : f32 to vector<1x128xf32>
        %42 = arith.mulf %40, %41 : vector<1x128xf32>
        %c0_26 = arith.constant 0 : index
        %c0_27 = arith.constant 0 : index
        %43 = vector.load %arg10[%c0_26, %c0_27] : memref<1x128xf32, #tpu.memory_space<vmem>>, vector<1x128xf32>
        %cst_28 = arith.constant 9.765625E-4 : f32
        %44 = vector.broadcast %cst_28 : f32 to vector<1x128xf32>
        %45 = arith.mulf %43, %44 : vector<1x128xf32>
        %46 = arith.mulf %42, %42 : vector<1x128xf32>
        %47 = arith.subf %45, %46 : vector<1x128xf32>
        %cst_29 = arith.constant 0.000000e+00 : f32
        %48 = vector.broadcast %cst_29 : f32 to vector<1x128xf32>
        %49 = arith.maximumf %47, %48 : vector<1x128xf32>
        %c0_30 = arith.constant 0 : index
        %c0_31 = arith.constant 0 : index
        %50 = vector.load %arg5[%c0_30, %c0_31] : memref<1x128xf32, #tpu.memory_space<vmem>>, vector<1x128xf32>
        %cst_32 = arith.constant 9.99999974E-6 : f32
        %51 = vector.broadcast %cst_32 : f32 to vector<1x128xf32>
        %52 = arith.addf %49, %51 : vector<1x128xf32>
        %53 = math.rsqrt %52 : vector<1x128xf32>
        %54 = arith.mulf %50, %53 : vector<1x128xf32>
        %c0_33 = arith.constant 0 : index
        %c0_34 = arith.constant 0 : index
        %55 = vector.load %arg6[%c0_33, %c0_34] : memref<1x128xf32, #tpu.memory_space<vmem>>, vector<1x128xf32>
        %56 = arith.mulf %42, %54 : vector<1x128xf32>
        %57 = arith.subf %55, %56 : vector<1x128xf32>
        %c0_35 = arith.constant 0 : index
        %c0_36 = arith.constant 0 : index
        %58 = vector.load %arg9[%c0_35, %c0_36] : memref<1x128xf32, #tpu.memory_space<vmem>>, vector<1x128xf32>
        tpu.vector_store %arg9[%c0_35, %c0_36], %54 {strides = array<i32>} : memref<1x128xf32, #tpu.memory_space<vmem>>, vector<1x128xf32>,
        %c0_37 = arith.constant 0 : index
        %c0_38 = arith.constant 0 : index
        %59 = vector.load %arg10[%c0_37, %c0_38] : memref<1x128xf32, #tpu.memory_space<vmem>>, vector<1x128xf32>
        tpu.vector_store %arg10[%c0_37, %c0_38], %57 {strides = array<i32>} : memref<1x128xf32, #tpu.memory_space<vmem>>, vector<1x128xf32>,
      } else {
      }
    } else {
    }
    %c1_i32 = arith.constant 1 : i32
    %5 = arith.cmpi eq, %arg0, %c1_i32 : i32
    %6 = arith.extui %5 : i1 to i32
    %c0_i32_1 = arith.constant 0 : i32
    %7 = arith.cmpi ne, %6, %c0_i32_1 : i32
    scf.if %7 {
      %8 = arith.index_cast %1 : i32 to index
      %c0 = arith.constant 0 : index
      %9 = vector.load %arg8[%8, %c0] : memref<1024x128xf32, #tpu.memory_space<vmem>>, vector<512x128xf32>
      %c0_2 = arith.constant 0 : index
      %c0_3 = arith.constant 0 : index
      %10 = vector.load %arg9[%c0_2, %c0_3] : memref<1x128xf32, #tpu.memory_space<vmem>>, vector<1x128xf32>
      %11 = vector.broadcast %10 : vector<1x128xf32> to vector<512x128xf32>
      %12 = arith.mulf %9, %11 : vector<512x128xf32>
      %c0_4 = arith.constant 0 : index
      %c0_5 = arith.constant 0 : index
      %13 = vector.load %arg10[%c0_4, %c0_5] : memref<1x128xf32, #tpu.memory_space<vmem>>, vector<1x128xf32>
      %14 = vector.broadcast %13 : vector<1x128xf32> to vector<512x128xf32>
      %15 = arith.addf %12, %14 : vector<512x128xf32>
      %cst = arith.constant 0.000000e+00 : f32
      %16 = vector.broadcast %cst : f32 to vector<512x128xf32>
      %17 = arith.cmpf oge, %15, %16 : vector<512x128xf32>
      %cst_6 = arith.constant 0.00999999977 : f32
      %18 = vector.broadcast %cst_6 : f32 to vector<512x128xf32>
      %19 = arith.mulf %18, %15 : vector<512x128xf32>
      %20 = arith.select %17, %15, %19 : vector<512x128xi1>, vector<512x128xf32>
      %c0_7 = arith.constant 0 : index
      %c0_8 = arith.constant 0 : index
      %21 = vector.load %arg7[%c0_7, %c0_8] : memref<512x128xf32, #tpu.memory_space<vmem>>, vector<512x128xf32>
      tpu.vector_store %arg7[%c0_7, %c0_8], %20 {strides = array<i32>} : memref<512x128xf32, #tpu.memory_space<vmem>>, vector<512x128xf32>,
    } else {
    }
    return
  }
  func.func @transform_0(%arg0: i32, %arg1: i32) -> (i32, i32) {
    %c1_i32 = arith.constant 1 : i32
    %0 = arith.subi %c1_i32, %arg0 : i32
    %1 = arith.muli %arg1, %0 : i32
    %c0_i32 = arith.constant 0 : i32
    %c0_i32_0 = arith.constant 0 : i32
    return %1, %c0_i32 : i32, i32
  }
  func.func @transform_1(%arg0: i32, %arg1: i32) -> (i32, i32) {
    %c0_i32 = arith.constant 0 : i32
    %c0_i32_0 = arith.constant 0 : i32
    %c0_i32_1 = arith.constant 0 : i32
    return %c0_i32, %c0_i32_0 : i32, i32
  }
  func.func @transform_2(%arg0: i32, %arg1: i32) -> (i32, i32) {
    %c0_i32 = arith.constant 0 : i32
    %c0_i32_0 = arith.constant 0 : i32
    %c0_i32_1 = arith.constant 0 : i32
    return %c0_i32, %c0_i32_0 : i32, i32
  }
  func.func @transform_3(%arg0: i32, %arg1: i32) -> (i32, i32) {
    %c0_i32 = arith.constant 0 : i32
    %c0_i32_0 = arith.constant 0 : i32
    %c0_i32_1 = arith.constant 0 : i32
    return %c0_i32, %c0_i32_0 : i32, i32
  }
  func.func @transform_4(%arg0: i32, %arg1: i32) -> (i32, i32) {
    %c0_i32 = arith.constant 0 : i32
    %c0_i32_0 = arith.constant 0 : i32
    %c0_i32_1 = arith.constant 0 : i32
    return %c0_i32, %c0_i32_0 : i32, i32
  }
  func.func @transform_5(%arg0: i32, %arg1: i32) -> (i32, i32) {
    %0 = arith.muli %arg1, %arg0 : i32
    %c0_i32 = arith.constant 0 : i32
    %c0_i32_0 = arith.constant 0 : i32
    return %0, %c0_i32 : i32, i32
  }
}

</mosaic_0001>

<llo_original>
// kernel: down_block_bn_forward.1
$region0: #{down_block_bn_forward.1}
  #allocation0 [shape = 'u32[]', space=smem, size = 0x4, offset = 0x4, fixed_abs, tag = 'smem constant byte address 0x4 - core index']
  #allocation1 [shape = 'u32[72,128]{1,0:T(1,128)}', space=vmem, size = 0x9000, scoped, tag = 'internal scratch']
  #allocation2 [shape = 'f32[1024,128]{1,0:T(8,128)}', space=vmem, size = 0x80000, scoped, tag = 'scratch operand']
  #allocation3 [shape = 'f32[1,128]{1,0:T(1,128)}', space=vmem, size = 0x200, scoped, tag = 'scratch operand']
  #allocation4 [shape = 'f32[1,128]{1,0:T(1,128)}', space=vmem, size = 0x200, scoped, tag = 'scratch operand']
  %s0 = inlined_call_operand.vmem [shape: bf16[1024,256], index: 0, kind: input, shape index: {}]
  %s1 = inlined_call_operand.vmem [shape: bf16[256,128], index: 1, kind: input, shape index: {}]
  %s2 = inlined_call_operand.vmem [shape: f32[1,128], index: 2, kind: input, shape index: {}]
  %s3 = inlined_call_operand.vmem [shape: f32[1,128], index: 3, kind: input, shape index: {}]
  %s4 = inlined_call_operand.vmem [shape: f32[1,128], index: 4, kind: input, shape index: {}]
  %s5 = inlined_call_operand.hbm [shape: f32[1024,128], index: 5, kind: output, shape index: {}]
  %s6 = sld [smem:[#allocation0]]
  $region69: #{down_block_bn_forward.1} parent=0
    _
  %s8 = ssub.s32 1, %s6
  %s9 = scalar_select 0, %s8, %s6
  $region1: #{down_block_bn_forward.1} parent=0
    #allocation5 [shape = 'u8[524288]{0}', space=vmem, size = 0x80000, scoped, tag = 'output window, operand 0']
    #allocation6 [shape = 's32[2]{0}', space=sflag, size = 0x8, scoped, tag = 'scoped memory for down_block_bn_forward.1']
    %10 = vsyncpa [#allocation6], 0
    %s11 = scalar_lea.sflag [#allocation6], 1
    %12 = vsyncpa %s11, 0
    loop: start=0, step=1, limit=6
    $region2: #{down_block_bn_forward.1} parent=1 // loop_pre_header
      _
    $region3: #{down_block_bn_forward.1} parent=1 // loop_header
      %s14 = sphi 0, %s18
      %p15 = scmp.ge.s32.totalorder %s14, 6
      %s21 = sphi 0, %s33
      %s22 = sphi 0, %s29
      %s23 = sphi 0, %s21
      %s24 = sphi 0, %s22
      %s25 = sphi 0, %s23
      %s26 = sphi 0, %s24
      %s40 = sphi 0, %s42
      %s43 = sphi 0, %s40
      %s44 = sphi 0, %s43
      %s60 = sphi 0, %s44
      %s64 = sphi 0, %s64
      %s66 = sphi 0, %s64
      %s67 = sphi 0, %s66
      %s81 = sphi 0, %s67
      %s85 = sphi 0, %s85
      %s87 = sphi 0, %s85
      %s88 = sphi 0, %s87
      %s102 = sphi 0, %s88
      %s106 = sphi 0, %s106
      %s108 = sphi 0, %s106
      %s109 = sphi 0, %s108
      %s123 = sphi 0, %s109
      %s127 = sphi 0, %s127
      %s129 = sphi 0, %s127
      %s130 = sphi 0, %s129
      %s144 = sphi 0, %s130
      %s152 = sphi 0, %s154
      %s155 = sphi 0, %s152
      %s156 = sphi 0, %s155
      %s172 = sphi 0, %s156
    $region4: #{down_block_bn_forward.1} parent=1 // loop_header_branch
      %17 = sbr.rel (%p15) target = $region8
    $region5: #{down_block_bn_forward.1} parent=1 // loop_body
      %s19 = ssub.s32 %s14, 1
      %s20 = ssub.s32 %s14, 2
      %s27 = sadd.s32 1, %s22
      %p28 = scmp.ge.s32.totalorder %s27, 2
      %s29 = scalar_select %p28, 0, %s27
      %s30 = sadd.s32 1, %s21
      %s31 = scalar_select %p28, %s30, %s21
      %p32 = scmp.ge.s32.totalorder %s31, 2
      %s33 = scalar_select %p32, 0, %s31
      %s34 = ssub.s32 1, %s21
      %s35 = smul.u32 %s22, %s34
      %s36 = ssub.s32 1, %s33
      %s37 = smul.u32 %s29, %s36
      %s38 = ssub.s32 %s35, %s37
      %p39 = scmp.eq.s32.totalorder %s38, 0
      %s41 = sadd.s32 %s40, 1
      %s42 = scalar_select %p39, %s40, %s41
      %p45 = pneg %p39
      %p46 = scmp.eq.s32.totalorder %s14, 3
      %p47 = por %p45, %p46
      %p48 = scmp.ne.s32.totalorder %s40, %s43
      %p49 = scmp.eq.s32.totalorder %s14, 0
      %p50 = por %p48, %p49
      %p51 = scmp.ne.s32.totalorder %s40, %s43
      %p52 = scmp.eq.s32.totalorder %s19, 3
      %p53 = por %p51, %p52
      %p54 = scmp.ne.s32.totalorder %s43, %s44
      %p55 = scmp.eq.s32.totalorder %s19, 0
      %p56 = por %p54, %p55
      %p57 = scmp.ne.s32.totalorder %s43, %s44
      %p58 = scmp.eq.s32.totalorder %s20, 3
      %p59 = por %p57, %p58
      %p61 = scmp.ne.s32.totalorder %s44, %s60
      %p62 = scmp.eq.s32.totalorder %s20, 0
      %p63 = por %p61, %p62
      %s65 = sadd.s32 %s64, 1
      %p68 = scmp.eq.s32.totalorder %s14, 3
      %p69 = scmp.ne.s32.totalorder %s64, %s66
      %p70 = scmp.eq.s32.totalorder %s14, 0
      %p71 = por %p69, %p70
      %p72 = scmp.ne.s32.totalorder %s64, %s66
      %p73 = scmp.eq.s32.totalorder %s19, 3
      %p74 = por %p72, %p73
      %p75 = scmp.ne.s32.totalorder %s66, %s67
      %p76 = scmp.eq.s32.totalorder %s19, 0
      %p77 = por %p75, %p76
      %p78 = scmp.ne.s32.totalorder %s66, %s67
      %p79 = scmp.eq.s32.totalorder %s20, 3
      %p80 = por %p78, %p79
      %p82 = scmp.ne.s32.totalorder %s67, %s81
      %p83 = scmp.eq.s32.totalorder %s20, 0
      %p84 = por %p82, %p83
      %s86 = sadd.s32 %s85, 1
      %p89 = scmp.eq.s32.totalorder %s14, 3
      %p90 = scmp.ne.s32.totalorder %s85, %s87
      %p91 = scmp.eq.s32.totalorder %s14, 0
      %p92 = por %p90, %p91
      %p93 = scmp.ne.s32.totalorder %s85, %s87
      %p94 = scmp.eq.s32.totalorder %s19, 3
      %p95 = por %p93, %p94
      %p96 = scmp.ne.s32.totalorder %s87, %s88
      %p97 = scmp.eq.s32.totalorder %s19, 0
      %p98 = por %p96, %p97
      %p99 = scmp.ne.s32.totalorder %s87, %s88
      %p100 = scmp.eq.s32.totalorder %s20, 3
      %p101 = por %p99, %p100
      %p103 = scmp.ne.s32.totalorder %s88, %s102
      %p104 = scmp.eq.s32.totalorder %s20, 0
      %p105 = por %p103, %p104
      %s107 = sadd.s32 %s106, 1
      %p110 = scmp.eq.s32.totalorder %s14, 3
      %p111 = scmp.ne.s32.totalorder %s106, %s108
      %p112 = scmp.eq.s32.totalorder %s14, 0
      %p113 = por %p111, %p112
      %p114 = scmp.ne.s32.totalorder %s106, %s108
      %p115 = scmp.eq.s32.totalorder %s19, 3
      %p116 = por %p114, %p115
      %p117 = scmp.ne.s32.totalorder %s108, %s109
      %p118 = scmp.eq.s32.totalorder %s19, 0
      %p119 = por %p117, %p118
      %p120 = scmp.ne.s32.totalorder %s108, %s109
      %p121 = scmp.eq.s32.totalorder %s20, 3
      %p122 = por %p120, %p121
      %p124 = scmp.ne.s32.totalorder %s109, %s123
      %p125 = scmp.eq.s32.totalorder %s20, 0
      %p126 = por %p124, %p125
      %s128 = sadd.s32 %s127, 1
      %p131 = scmp.eq.s32.totalorder %s14, 3
      %p132 = scmp.ne.s32.totalorder %s127, %s129
      %p133 = scmp.eq.s32.totalorder %s14, 0
      %p134 = por %p132, %p133
      %p135 = scmp.ne.s32.totalorder %s127, %s129
      %p136 = scmp.eq.s32.totalorder %s19, 3
      %p137 = por %p135, %p136
      %p138 = scmp.ne.s32.totalorder %s129, %s130
      %p139 = scmp.eq.s32.totalorder %s19, 0
      %p140 = por %p138, %p139
      %p141 = scmp.ne.s32.totalorder %s129, %s130
      %p142 = scmp.eq.s32.totalorder %s20, 3
      %p143 = por %p141, %p142
      %p145 = scmp.ne.s32.totalorder %s130, %s144
      %p146 = scmp.eq.s32.totalorder %s20, 0
      %p147 = por %p145, %p146
      %s148 = smul.u32 %s22, %s21
      %s149 = smul.u32 %s29, %s33
      %s150 = ssub.s32 %s148, %s149
      %p151 = scmp.eq.s32.totalorder %s150, 0
      %s153 = sadd.s32 %s152, 1
      %s154 = scalar_select %p151, %s152, %s153
      %p157 = pneg %p151
      %p158 = scmp.eq.s32.totalorder %s14, 3
      %p159 = por %p157, %p158
      %p160 = scmp.ne.s32.totalorder %s152, %s155
      %p161 = scmp.eq.s32.totalorder %s14, 0
      %p162 = por %p160, %p161
      %p163 = scmp.ne.s32.totalorder %s152, %s155
      %p164 = scmp.eq.s32.totalorder %s19, 3
      %p165 = por %p163, %p164
      %p166 = scmp.ne.s32.totalorder %s155, %s156
      %p167 = scmp.eq.s32.totalorder %s19, 0
      %p168 = por %p166, %p167
      %p169 = scmp.ne.s32.totalorder %s155, %s156
      %p170 = scmp.eq.s32.totalorder %s20, 3
      %p171 = por %p169, %p170
      %p173 = scmp.ne.s32.totalorder %s156, %s172
      %p174 = scmp.eq.s32.totalorder %s20, 0
      %p175 = por %p173, %p174
      %p176 = scmp.le.s32.totalorder 1, %s14
      %p177 = scmp.lt.s32.totalorder %s14, 5
      %p178 = pnand %p176, %p177
      %p179 = pneg %p178
      // Predicated region
      $region9: #{down_block_bn_forward.1} parent=5 // pred_check
        _
      $region10: #{down_block_bn_forward.1} parent=5 // pred_check_branch
        %181 = sbr.rel (%p178) target = $region12
      $region11: #{down_block_bn_forward.1} parent=5 // pred_region
        %s182 = ssub.s32 %s14, 1
        // Predicated region
        $region13: #{down_block_bn_forward.1} parent=11 // pred_check
          %p183 = pneg %p77
        $region14: #{down_block_bn_forward.1} parent=11 // pred_check_branch
          %185 = sbr.rel (%p183) target = $region16
        $region15: #{down_block_bn_forward.1} parent=11 // pred_region
          _
        $region16: #{down_block_bn_forward.1} parent=11 // pred_fallthru
          _
        // Predicated region
        $region17: #{down_block_bn_forward.1} parent=11 // pred_check
          %p186 = pneg %p98
        $region18: #{down_block_bn_forward.1} parent=11 // pred_check_branch
          %188 = sbr.rel (%p186) target = $region20
        $region19: #{down_block_bn_forward.1} parent=11 // pred_region
          _
        $region20: #{down_block_bn_forward.1} parent=11 // pred_fallthru
          _
        // Predicated region
        $region21: #{down_block_bn_forward.1} parent=11 // pred_check
          %p189 = pneg %p119
        $region22: #{down_block_bn_forward.1} parent=11 // pred_check_branch
          %191 = sbr.rel (%p189) target = $region24
        $region23: #{down_block_bn_forward.1} parent=11 // pred_region
          _
        $region24: #{down_block_bn_forward.1} parent=11 // pred_fallthru
          _
        // Predicated region
        $region25: #{down_block_bn_forward.1} parent=11 // pred_check
          %p192 = pneg %p140
        $region26: #{down_block_bn_forward.1} parent=11 // pred_check_branch
          %194 = sbr.rel (%p192) target = $region28
        $region27: #{down_block_bn_forward.1} parent=11 // pred_region
          _
        $region28: #{down_block_bn_forward.1} parent=11 // pred_fallthru
          _
      $region12: #{down_block_bn_forward.1} parent=5 // pred_fallthru
        _
      %p195 = scmp.lt.s32.totalorder %s14, 4
      // Predicated region
      $region29: #{down_block_bn_forward.1} parent=5 // pred_check
        %p196 = pneg %p195
      $region30: #{down_block_bn_forward.1} parent=5 // pred_check_branch
        %198 = sbr.rel (%p196) target = $region32
      $region31: #{down_block_bn_forward.1} parent=5 // pred_region
        // Predicated region
        $region33: #{down_block_bn_forward.1} parent=31 // pred_check
          %p199 = pneg %p50
        $region34: #{down_block_bn_forward.1} parent=31 // pred_check_branch
          %201 = sbr.rel (%p199) target = $region36
        $region35: #{down_block_bn_forward.1} parent=31 // pred_region
          %s202 = ssub.s32 1, %s21
          %s203 = smul.u32 %s22, %s202
          %s204 = smul.u32 64, %s203
          %p205 = scmp.lt.s32.totalorder %s204, 127
          %s206 = scalar_select %p205, %s204, 127
          %s207 = smul.addr %s206, 2
          %s208 = smul.addr %s207, 4
          %s209 = scalar_lea.vmem %s0, %s208
          %s210 = ssub.s32 1, %s21
          %s211 = smul.u32 %s22, %s210
          %s212 = smul.u32 64, %s211
        $region36: #{down_block_bn_forward.1} parent=31 // pred_fallthru
          _
      $region32: #{down_block_bn_forward.1} parent=5 // pred_fallthru
        _
      %p213 = scmp.le.s32.totalorder 1, %s14
      %p214 = scmp.lt.s32.totalorder %s14, 5
      %p215 = pnand %p213, %p214
      %p216 = pneg %p215
      // Predicated region
      $region37: #{down_block_bn_forward.1} parent=5 // pred_check
        _
      $region38: #{down_block_bn_forward.1} parent=5 // pred_check_branch
        %218 = sbr.rel (%p215) target = $region40
      $region39: #{down_block_bn_forward.1} parent=5 // pred_region
        %s219 = ssub.s32 %s14, 1
        %s220 = ssub.s32 1, %s23
        %s221 = smul.u32 %s24, %s220
        %s222 = smul.u32 64, %s221
        %p223 = scmp.lt.s32.totalorder %s222, 127
        %s224 = scalar_select %p223, %s222, 127
        %s225 = smul.addr %s224, 2
        %s226 = smul.addr %s225, 4
        %s227 = scalar_lea.vmem %s0, %s226
        %p228 = pneg %p56
        %p229 = pneg %p53
        %p230 = pneg %p77
        %p231 = pneg %p74
        %p232 = pneg %p98
        %p233 = pneg %p95
        %p234 = pneg %p119
        %p235 = pneg %p116
        %p236 = pneg %p140
        %p237 = pneg %p137
        %p238 = pneg %p168
        %p239 = pneg %p165
        %s240 = sand.u32 %s155, 1
        %s241 = scalar_lea.sflag [#allocation6], %s240
        %s242 = sand.u32 %s155, 1
        %s243 = smul.addr %s242, 512
        %s244 = scalar_lea.vmem [#allocation5], %s243
        %s245 = ssub.s32 1, %s23
        %s246 = smul.u32 %s24, %s245
        %s247 = smul.u32 64, %s246
        %p248 = scmp.lt.s32.totalorder %s247, 127
        %s249 = scalar_select %p248, %s247, 127
        %s250 = smul.addr %s249, 2
        %s251 = smul.addr %s250, 4
        %s252 = scalar_lea.vmem %s0, %s251
        %s253 = ssub.s32 1, %s23
        %s254 = smul.u32 %s24, %s253
        %s255 = smul.u32 64, %s254
        %s256 = smul.u32 %s24, %s23
        %s257 = smul.u32 64, %s256
        %s258 = smul.u32 %s24, 512
        %p259 = scmp.eq.s32.totalorder %s23, 0
        // Predicated region
        $region41: #{down_block_bn_forward.1} parent=39 // pred_check
          %p260 = pneg %p259
        $region42: #{down_block_bn_forward.1} parent=39 // pred_check_branch
          %262 = sbr.rel (%p260) target = $region44
        $region43: #{down_block_bn_forward.1} parent=39 // pred_region
          %v263 = vld [vmem:[%s252] sm:$0xff]
          %v264 = vld [vmem:[%s252 + $0x8] sm:$0xff]
          %v265 = vld [vmem:[%s252 + $0x10] sm:$0xff]
          %v266 = vld [vmem:[%s252 + $0x18] sm:$0xff]
          %v267 = vld [vmem:[%s252 + $0x20] sm:$0xff]
          %v268 = vld [vmem:[%s252 + $0x28] sm:$0xff]
          %v269 = vld [vmem:[%s252 + $0x30] sm:$0xff]
          %v270 = vld [vmem:[%s252 + $0x38] sm:$0xff]
          %v271 = vld [vmem:[%s252 + $0x40] sm:$0xff]
          %v272 = vld [vmem:[%s252 + $0x48] sm:$0xff]
          %v273 = vld [vmem:[%s252 + $0x50] sm:$0xff]
          %v274 = vld [vmem:[%s252 + $0x58] sm:$0xff]
          %v275 = vld [vmem:[%s252 + $0x60] sm:$0xff]
          %v276 = vld [vmem:[%s252 + $0x68] sm:$0xff]
          %v277 = vld [vmem:[%s252 + $0x70] sm:$0xff]
          %v278 = vld [vmem:[%s252 + $0x78] sm:$0xff]
          %v279 = vld [vmem:[%s252 + $0x80] sm:$0xff]
          %v280 = vld [vmem:[%s252 + $0x88] sm:$0xff]
          %v281 = vld [vmem:[%s252 + $0x90] sm:$0xff]
          %v282 = vld [vmem:[%s252 + $0x98] sm:$0xff]
          %v283 = vld [vmem:[%s252 + $0xa0] sm:$0xff]
          %v284 = vld [vmem:[%s252 + $0xa8] sm:$0xff]
          %v285 = vld [vmem:[%s252 + $0xb0] sm:$0xff]
          %v286 = vld [vmem:[%s252 + $0xb8] sm:$0xff]
          %v287 = vld [vmem:[%s252 + $0xc0] sm:$0xff]
          %v288 = vld [vmem:[%s252 + $0xc8] sm:$0xff]
          %v289 = vld [vmem:[%s252 + $0xd0] sm:$0xff]
          %v290 = vld [vmem:[%s252 + $0xd8] sm:$0xff]
          %v291 = vld [vmem:[%s252 + $0xe0] sm:$0xff]
          %v292 = vld [vmem:[%s252 + $0xe8] sm:$0xff]
          %v293 = vld [vmem:[%s252 + $0xf0] sm:$0xff]
          %v294 = vld [vmem:[%s252 + $0xf8] sm:$0xff]
          %v295 = vld [vmem:[%s252 + $0x100] sm:$0xff]
          %v296 = vld [vmem:[%s252 + $0x108] sm:$0xff]
          %v297 = vld [vmem:[%s252 + $0x110] sm:$0xff]
          %v298 = vld [vmem:[%s252 + $0x118] sm:$0xff]
          %v299 = vld [vmem:[%s252 + $0x120] sm:$0xff]
          %v300 = vld [vmem:[%s252 + $0x128] sm:$0xff]
          %v301 = vld [vmem:[%s252 + $0x130] sm:$0xff]
          %v302 = vld [vmem:[%s252 + $0x138] sm:$0xff]
          %v303 = vld [vmem:[%s252 + $0x140] sm:$0xff]
          %v304 = vld [vmem:[%s252 + $0x148] sm:$0xff]
          %v305 = vld [vmem:[%s252 + $0x150] sm:$0xff]
          %v306 = vld [vmem:[%s252 + $0x158] sm:$0xff]
          %v307 = vld [vmem:[%s252 + $0x160] sm:$0xff]
          %v308 = vld [vmem:[%s252 + $0x168] sm:$0xff]
          %v309 = vld [vmem:[%s252 + $0x170] sm:$0xff]
          %v310 = vld [vmem:[%s252 + $0x178] sm:$0xff]
          %v311 = vld [vmem:[%s252 + $0x180] sm:$0xff]
          %v312 = vld [vmem:[%s252 + $0x188] sm:$0xff]
          %v313 = vld [vmem:[%s252 + $0x190] sm:$0xff]
          %v314 = vld [vmem:[%s252 + $0x198] sm:$0xff]
          %v315 = vld [vmem:[%s252 + $0x1a0] sm:$0xff]
          %v316 = vld [vmem:[%s252 + $0x1a8] sm:$0xff]
          %v317 = vld [vmem:[%s252 + $0x1b0] sm:$0xff]
          %v318 = vld [vmem:[%s252 + $0x1b8] sm:$0xff]
          %v319 = vld [vmem:[%s252 + $0x1c0] sm:$0xff]
          %v320 = vld [vmem:[%s252 + $0x1c8] sm:$0xff]
          %v321 = vld [vmem:[%s252 + $0x1d0] sm:$0xff]
          %v322 = vld [vmem:[%s252 + $0x1d8] sm:$0xff]
          %v323 = vld [vmem:[%s252 + $0x1e0] sm:$0xff]
          %v324 = vld [vmem:[%s252 + $0x1e8] sm:$0xff]
          %v325 = vld [vmem:[%s252 + $0x1f0] sm:$0xff]
          %v326 = vld [vmem:[%s252 + $0x1f8] sm:$0xff]
          %v327 = vld [vmem:[%s1] sm:$0xf]
          %v328 = vld [vmem:[%s1 + $0x4] sm:$0xf]
          %v329 = vld [vmem:[%s1 + $0x8] sm:$0xf]
          %v330 = vld [vmem:[%s1 + $0xc] sm:$0xf]
          %v331 = vld [vmem:[%s1 + $0x10] sm:$0xf]
          %v332 = vld [vmem:[%s1 + $0x14] sm:$0xf]
          %v333 = vld [vmem:[%s1 + $0x18] sm:$0xf]
          %v334 = vld [vmem:[%s1 + $0x1c] sm:$0xf]
          %v335 = vld [vmem:[%s1 + $0x20] sm:$0xf]
          %v336 = vld [vmem:[%s1 + $0x24] sm:$0xf]
          %v337 = vld [vmem:[%s1 + $0x28] sm:$0xf]
          %v338 = vld [vmem:[%s1 + $0x2c] sm:$0xf]
          %v339 = vld [vmem:[%s1 + $0x30] sm:$0xf]
          %v340 = vld [vmem:[%s1 + $0x34] sm:$0xf]
          %v341 = vld [vmem:[%s1 + $0x38] sm:$0xf]
          %v342 = vld [vmem:[%s1 + $0x3c] sm:$0xf]
          %v343 = vld [vmem:[%s1 + $0x40] sm:$0xf]
          %v344 = vld [vmem:[%s1 + $0x44] sm:$0xf]
          %v345 = vld [vmem:[%s1 + $0x48] sm:$0xf]
          %v346 = vld [vmem:[%s1 + $0x4c] sm:$0xf]
          %v347 = vld [vmem:[%s1 + $0x50] sm:$0xf]
          %v348 = vld [vmem:[%s1 + $0x54] sm:$0xf]
          %v349 = vld [vmem:[%s1 + $0x58] sm:$0xf]
          %v350 = vld [vmem:[%s1 + $0x5c] sm:$0xf]
          %v351 = vld [vmem:[%s1 + $0x60] sm:$0xf]
          %v352 = vld [vmem:[%s1 + $0x64] sm:$0xf]
          %v353 = vld [vmem:[%s1 + $0x68] sm:$0xf]
          %v354 = vld [vmem:[%s1 + $0x6c] sm:$0xf]
          %v355 = vld [vmem:[%s1 + $0x70] sm:$0xf]
          %v356 = vld [vmem:[%s1 + $0x74] sm:$0xf]
          %v357 = vld [vmem:[%s1 + $0x78] sm:$0xf]
          %v358 = vld [vmem:[%s1 + $0x7c] sm:$0xf]
          %v359 = vld [vmem:[%s2] sm:$0x1]
          %v361 = vperm.slane %v359, 0
          %v427 = vunpack.c.l.b16 %v263
          %v428 = vunpack.c.h.b16 %v263
          %v429 = vunpack.c.l.b16 %v264
          %v430 = vunpack.c.h.b16 %v264
          %v431 = vunpack.c.l.b16 %v265
          %v432 = vunpack.c.h.b16 %v265
          %v433 = vunpack.c.l.b16 %v266
          %v434 = vunpack.c.h.b16 %v266
          %v435 = vunpack.c.l.b16 %v267
          %v436 = vunpack.c.h.b16 %v267
          %v437 = vunpack.c.l.b16 %v268
          %v438 = vunpack.c.h.b16 %v268
          %v439 = vunpack.c.l.b16 %v269
          %v440 = vunpack.c.h.b16 %v269
          %v441 = vunpack.c.l.b16 %v270
          %v442 = vunpack.c.h.b16 %v270
          %v443 = vunpack.c.l.b16 %v271
          %v444 = vunpack.c.h.b16 %v271
          %v445 = vunpack.c.l.b16 %v272
          %v446 = vunpack.c.h.b16 %v272
          %v447 = vunpack.c.l.b16 %v273
          %v448 = vunpack.c.h.b16 %v273
          %v449 = vunpack.c.l.b16 %v274
          %v450 = vunpack.c.h.b16 %v274
          %v451 = vunpack.c.l.b16 %v275
          %v452 = vunpack.c.h.b16 %v275
          %v453 = vunpack.c.l.b16 %v276
          %v454 = vunpack.c.h.b16 %v276
          %v455 = vunpack.c.l.b16 %v277
          %v456 = vunpack.c.h.b16 %v277
          %v457 = vunpack.c.l.b16 %v278
          %v458 = vunpack.c.h.b16 %v278
          %v459 = vunpack.c.l.b16 %v279
          %v460 = vunpack.c.h.b16 %v279
          %v461 = vunpack.c.l.b16 %v280
          %v462 = vunpack.c.h.b16 %v280
          %v463 = vunpack.c.l.b16 %v281
          %v464 = vunpack.c.h.b16 %v281
          %v465 = vunpack.c.l.b16 %v282
          %v466 = vunpack.c.h.b16 %v282
          %v467 = vunpack.c.l.b16 %v283
          %v468 = vunpack.c.h.b16 %v283
          %v469 = vunpack.c.l.b16 %v284
          %v470 = vunpack.c.h.b16 %v284
          %v471 = vunpack.c.l.b16 %v285
          %v472 = vunpack.c.h.b16 %v285
          %v473 = vunpack.c.l.b16 %v286
          %v474 = vunpack.c.h.b16 %v286
          %v475 = vunpack.c.l.b16 %v287
          %v476 = vunpack.c.h.b16 %v287
          %v477 = vunpack.c.l.b16 %v288
          %v478 = vunpack.c.h.b16 %v288
          %v479 = vunpack.c.l.b16 %v289
          %v480 = vunpack.c.h.b16 %v289
          %v481 = vunpack.c.l.b16 %v290
          %v482 = vunpack.c.h.b16 %v290
          %v483 = vunpack.c.l.b16 %v291
          %v484 = vunpack.c.h.b16 %v291
          %v485 = vunpack.c.l.b16 %v292
          %v486 = vunpack.c.h.b16 %v292
          %v487 = vunpack.c.l.b16 %v293
          %v488 = vunpack.c.h.b16 %v293
          %v489 = vunpack.c.l.b16 %v294
          %v490 = vunpack.c.h.b16 %v294
          %v491 = vunpack.c.l.b16 %v295
          %v492 = vunpack.c.h.b16 %v295
          %v493 = vunpack.c.l.b16 %v296
          %v494 = vunpack.c.h.b16 %v296
          %v495 = vunpack.c.l.b16 %v297
          %v496 = vunpack.c.h.b16 %v297
          %v497 = vunpack.c.l.b16 %v298
          %v498 = vunpack.c.h.b16 %v298
          %v499 = vunpack.c.l.b16 %v299
          %v500 = vunpack.c.h.b16 %v299
          %v501 = vunpack.c.l.b16 %v300
          %v502 = vunpack.c.h.b16 %v300
          %v503 = vunpack.c.l.b16 %v301
          %v504 = vunpack.c.h.b16 %v301
          %v505 = vunpack.c.l.b16 %v302
          %v506 = vunpack.c.h.b16 %v302
          %v507 = vunpack.c.l.b16 %v303
          %v508 = vunpack.c.h.b16 %v303
          %v509 = vunpack.c.l.b16 %v304
          %v510 = vunpack.c.h.b16 %v304
          %v511 = vunpack.c.l.b16 %v305
          %v512 = vunpack.c.h.b16 %v305
          %v513 = vunpack.c.l.b16 %v306
          %v514 = vunpack.c.h.b16 %v306
          %v515 = vunpack.c.l.b16 %v307
          %v516 = vunpack.c.h.b16 %v307
          %v517 = vunpack.c.l.b16 %v308
          %v518 = vunpack.c.h.b16 %v308
          %v519 = vunpack.c.l.b16 %v309
          %v520 = vunpack.c.h.b16 %v309
          %v521 = vunpack.c.l.b16 %v310
          %v522 = vunpack.c.h.b16 %v310
          %v523 = vunpack.c.l.b16 %v311
          %v524 = vunpack.c.h.b16 %v311
          %v525 = vunpack.c.l.b16 %v312
          %v526 = vunpack.c.h.b16 %v312
          %v527 = vunpack.c.l.b16 %v313
          %v528 = vunpack.c.h.b16 %v313
          %v529 = vunpack.c.l.b16 %v314
          %v530 = vunpack.c.h.b16 %v314
          %v531 = vunpack.c.l.b16 %v315
          %v532 = vunpack.c.h.b16 %v315
          %v533 = vunpack.c.l.b16 %v316
          %v534 = vunpack.c.h.b16 %v316
          %v535 = vunpack.c.l.b16 %v317
          %v536 = vunpack.c.h.b16 %v317
          %v537 = vunpack.c.l.b16 %v318
          %v538 = vunpack.c.h.b16 %v318
          %v539 = vunpack.c.l.b16 %v319
          %v540 = vunpack.c.h.b16 %v319
          %v541 = vunpack.c.l.b16 %v320
          %v542 = vunpack.c.h.b16 %v320
          %v543 = vunpack.c.l.b16 %v321
          %v544 = vunpack.c.h.b16 %v321
          %v545 = vunpack.c.l.b16 %v322
          %v546 = vunpack.c.h.b16 %v322
          %v547 = vunpack.c.l.b16 %v323
          %v548 = vunpack.c.h.b16 %v323
          %v549 = vunpack.c.l.b16 %v324
          %v550 = vunpack.c.h.b16 %v324
          %v551 = vunpack.c.l.b16 %v325
          %v552 = vunpack.c.h.b16 %v325
          %v553 = vunpack.c.l.b16 %v326
          %v554 = vunpack.c.h.b16 %v326
          %v555 = vpack.c.b16 %v429, %v427
          %v556 = vpack.c.b16 %v430, %v428
          %v557 = vpack.c.b16 %v433, %v431
          %v558 = vpack.c.b16 %v434, %v432
          %v559 = vpack.c.b16 %v437, %v435
          %v560 = vpack.c.b16 %v438, %v436
          %v561 = vpack.c.b16 %v441, %v439
          %v562 = vpack.c.b16 %v442, %v440
          %v563 = vpack.c.b16 %v445, %v443
          %v564 = vpack.c.b16 %v446, %v444
          %v565 = vpack.c.b16 %v449, %v447
          %v566 = vpack.c.b16 %v450, %v448
          %v567 = vpack.c.b16 %v453, %v451
          %v568 = vpack.c.b16 %v454, %v452
          %v569 = vpack.c.b16 %v457, %v455
          %v570 = vpack.c.b16 %v458, %v456
          %v571 = vpack.c.b16 %v461, %v459
          %v572 = vpack.c.b16 %v462, %v460
          %v573 = vpack.c.b16 %v465, %v463
          %v574 = vpack.c.b16 %v466, %v464
          %v575 = vpack.c.b16 %v469, %v467
          %v576 = vpack.c.b16 %v470, %v468
          %v577 = vpack.c.b16 %v473, %v471
          %v578 = vpack.c.b16 %v474, %v472
          %v579 = vpack.c.b16 %v477, %v475
          %v580 = vpack.c.b16 %v478, %v476
          %v581 = vpack.c.b16 %v481, %v479
          %v582 = vpack.c.b16 %v482, %v480
          %v583 = vpack.c.b16 %v485, %v483
          %v584 = vpack.c.b16 %v486, %v484
          %v585 = vpack.c.b16 %v489, %v487
          %v586 = vpack.c.b16 %v490, %v488
          %v587 = vpack.c.b16 %v493, %v491
          %v588 = vpack.c.b16 %v494, %v492
          %v589 = vpack.c.b16 %v497, %v495
          %v590 = vpack.c.b16 %v498, %v496
          %v591 = vpack.c.b16 %v501, %v499
          %v592 = vpack.c.b16 %v502, %v500
          %v593 = vpack.c.b16 %v505, %v503
          %v594 = vpack.c.b16 %v506, %v504
          %v595 = vpack.c.b16 %v509, %v507
          %v596 = vpack.c.b16 %v510, %v508
          %v597 = vpack.c.b16 %v513, %v511
          %v598 = vpack.c.b16 %v514, %v512
          %v599 = vpack.c.b16 %v517, %v515
          %v600 = vpack.c.b16 %v518, %v516
          %v601 = vpack.c.b16 %v521, %v519
          %v602 = vpack.c.b16 %v522, %v520
          %v603 = vpack.c.b16 %v525, %v523
          %v604 = vpack.c.b16 %v526, %v524
          %v605 = vpack.c.b16 %v529, %v527
          %v606 = vpack.c.b16 %v530, %v528
          %v607 = vpack.c.b16 %v533, %v531
          %v608 = vpack.c.b16 %v534, %v532
          %v609 = vpack.c.b16 %v537, %v535
          %v610 = vpack.c.b16 %v538, %v536
          %v611 = vpack.c.b16 %v541, %v539
          %v612 = vpack.c.b16 %v542, %v540
          %v613 = vpack.c.b16 %v545, %v543
          %v614 = vpack.c.b16 %v546, %v544
          %v615 = vpack.c.b16 %v549, %v547
          %v616 = vpack.c.b16 %v550, %v548
          %v617 = vpack.c.b16 %v553, %v551
          %v618 = vpack.c.b16 %v554, %v552
          %v715 = vunpack.c.l.b16 %v327
          %v716 = vunpack.c.l.b16 %v328
          %v717 = vunpack.c.l.b16 %v329
          %v718 = vunpack.c.l.b16 %v330
          %v719 = vunpack.c.l.b16 %v331
          %v720 = vunpack.c.l.b16 %v332
          %v721 = vunpack.c.l.b16 %v333
          %v722 = vunpack.c.l.b16 %v334
          %v723 = vunpack.c.l.b16 %v335
          %v724 = vunpack.c.l.b16 %v336
          %v725 = vunpack.c.l.b16 %v337
          %v726 = vunpack.c.l.b16 %v338
          %v727 = vunpack.c.l.b16 %v339
          %v728 = vunpack.c.l.b16 %v340
          %v729 = vunpack.c.l.b16 %v341
          %v730 = vunpack.c.l.b16 %v342
          %v731 = vunpack.c.l.b16 %v343
          %v732 = vunpack.c.l.b16 %v344
          %v733 = vunpack.c.l.b16 %v345
          %v734 = vunpack.c.l.b16 %v346
          %v735 = vunpack.c.l.b16 %v347
          %v736 = vunpack.c.l.b16 %v348
          %v737 = vunpack.c.l.b16 %v349
          %v738 = vunpack.c.l.b16 %v350
          %v739 = vunpack.c.l.b16 %v351
          %v740 = vunpack.c.l.b16 %v352
          %v741 = vunpack.c.l.b16 %v353
          %v742 = vunpack.c.l.b16 %v354
          %v743 = vunpack.c.l.b16 %v355
          %v744 = vunpack.c.l.b16 %v356
          %v745 = vunpack.c.l.b16 %v357
          %v746 = vunpack.c.l.b16 %v358
          %v747 = vpack.c.b16 %v716, %v715
          %v748 = vpack.c.b16 %v718, %v717
          %v749 = vpack.c.b16 %v720, %v719
          %v750 = vpack.c.b16 %v722, %v721
          %v751 = vpack.c.b16 %v724, %v723
          %v752 = vpack.c.b16 %v726, %v725
          %v753 = vpack.c.b16 %v728, %v727
          %v754 = vpack.c.b16 %v730, %v729
          %v755 = vpack.c.b16 %v732, %v731
          %v756 = vpack.c.b16 %v734, %v733
          %v757 = vpack.c.b16 %v736, %v735
          %v758 = vpack.c.b16 %v738, %v737
          %v759 = vpack.c.b16 %v740, %v739
          %v760 = vpack.c.b16 %v742, %v741
          %v761 = vpack.c.b16 %v744, %v743
          %v762 = vpack.c.b16 %v746, %v745
          %779 = vmatpush.bf16.msra.mxu0 %v754
          %780 = vmatpush.bf16.msra.mxu0 %v753
          %781 = vmatpush.bf16.msra.mxu0 %v752
          %782 = vmatpush.bf16.msra.mxu0 %v751
          %783 = vmatpush.bf16.msra.mxu0 %v750
          %784 = vmatpush.bf16.msra.mxu0 %v749
          %785 = vmatpush.bf16.msra.mxu0 %v748
          %786 = vmatpush.bf16.msra.mxu0 %v747
          %787 = vmatmul.bf16.gmra.mxu0 %v555
          %v788 = vpop.f32.mrf.mxu0
          %v789 = vadd.f32 %v361, %v788
          %v790 = vpop.f32.mrf.mxu0
          %v791 = vadd.f32 %v361, %v790
          %792 = vmatmul.bf16.gmra.mxu0 %v557
          %v793 = vpop.f32.mrf.mxu0
          %v794 = vadd.f32 %v361, %v793
          %v795 = vpop.f32.mrf.mxu0
          %v796 = vadd.f32 %v361, %v795
          %797 = vmatmul.bf16.gmra.mxu0 %v559
          %v798 = vpop.f32.mrf.mxu0
          %v799 = vadd.f32 %v361, %v798
          %v800 = vpop.f32.mrf.mxu0
          %v801 = vadd.f32 %v361, %v800
          %802 = vmatmul.bf16.gmra.mxu0 %v561
          %v803 = vpop.f32.mrf.mxu0
          %v804 = vadd.f32 %v361, %v803
          %v805 = vpop.f32.mrf.mxu0
          %v806 = vadd.f32 %v361, %v805
          %807 = vmatmul.bf16.gmra.mxu0 %v563
          %v808 = vpop.f32.mrf.mxu0
          %v809 = vadd.f32 %v361, %v808
          %v810 = vpop.f32.mrf.mxu0
          %v811 = vadd.f32 %v361, %v810
          %812 = vmatmul.bf16.gmra.mxu0 %v565
          %v813 = vpop.f32.mrf.mxu0
          %v814 = vadd.f32 %v361, %v813
          %v815 = vpop.f32.mrf.mxu0
          %v816 = vadd.f32 %v361, %v815
          %817 = vmatmul.bf16.gmra.mxu0 %v567
          %v818 = vpop.f32.mrf.mxu0
          %v819 = vadd.f32 %v361, %v818
          %v820 = vpop.f32.mrf.mxu0
          %v821 = vadd.f32 %v361, %v820
          %822 = vmatmul.bf16.gmra.mxu0 %v569
          %v823 = vpop.f32.mrf.mxu0
          %v824 = vadd.f32 %v361, %v823
          %v825 = vpop.f32.mrf.mxu0
          %v826 = vadd.f32 %v361, %v825
          %827 = vmatmul.bf16.gmra.mxu0 %v571
          %v828 = vpop.f32.mrf.mxu0
          %v829 = vadd.f32 %v361, %v828
          %v830 = vpop.f32.mrf.mxu0
          %v831 = vadd.f32 %v361, %v830
          %832 = vmatmul.bf16.gmra.mxu0 %v573
          %v833 = vpop.f32.mrf.mxu0
          %v834 = vadd.f32 %v361, %v833
          %v835 = vpop.f32.mrf.mxu0
          %v836 = vadd.f32 %v361, %v835
          %837 = vmatmul.bf16.gmra.mxu0 %v575
          %v838 = vpop.f32.mrf.mxu0
          %v839 = vadd.f32 %v361, %v838
          %v840 = vpop.f32.mrf.mxu0
          %v841 = vadd.f32 %v361, %v840
          %842 = vmatmul.bf16.gmra.mxu0 %v577
          %v843 = vpop.f32.mrf.mxu0
          %v844 = vadd.f32 %v361, %v843
          %v845 = vpop.f32.mrf.mxu0
          %v846 = vadd.f32 %v361, %v845
          %847 = vmatmul.bf16.gmra.mxu0 %v579
          %v848 = vpop.f32.mrf.mxu0
          %v849 = vadd.f32 %v361, %v848
          %v850 = vpop.f32.mrf.mxu0
          %v851 = vadd.f32 %v361, %v850
          %852 = vmatmul.bf16.gmra.mxu0 %v581
          %v853 = vpop.f32.mrf.mxu0
          %v854 = vadd.f32 %v361, %v853
          %v855 = vpop.f32.mrf.mxu0
          %v856 = vadd.f32 %v361, %v855
          %857 = vmatmul.bf16.gmra.mxu0 %v583
          %v858 = vpop.f32.mrf.mxu0
          %v859 = vadd.f32 %v361, %v858
          %v860 = vpop.f32.mrf.mxu0
          %v861 = vadd.f32 %v361, %v860
          %862 = vmatmul.bf16.gmra.mxu0 %v585
          %v863 = vpop.f32.mrf.mxu0
          %v864 = vadd.f32 %v361, %v863
          %v865 = vpop.f32.mrf.mxu0
          %v866 = vadd.f32 %v361, %v865
          %867 = vmatmul.bf16.gmra.mxu0 %v587
          %v868 = vpop.f32.mrf.mxu0
          %v869 = vadd.f32 %v361, %v868
          %v870 = vpop.f32.mrf.mxu0
          %v871 = vadd.f32 %v361, %v870
          %872 = vmatmul.bf16.gmra.mxu0 %v589
          %v873 = vpop.f32.mrf.mxu0
          %v874 = vadd.f32 %v361, %v873
          %v875 = vpop.f32.mrf.mxu0
          %v876 = vadd.f32 %v361, %v875
          %877 = vmatmul.bf16.gmra.mxu0 %v591
          %v878 = vpop.f32.mrf.mxu0
          %v879 = vadd.f32 %v361, %v878
          %v880 = vpop.f32.mrf.mxu0
          %v881 = vadd.f32 %v361, %v880
          %882 = vmatmul.bf16.gmra.mxu0 %v593
          %v883 = vpop.f32.mrf.mxu0
          %v884 = vadd.f32 %v361, %v883
          %v885 = vpop.f32.mrf.mxu0
          %v886 = vadd.f32 %v361, %v885
          %887 = vmatmul.bf16.gmra.mxu0 %v595
          %v888 = vpop.f32.mrf.mxu0
          %v889 = vadd.f32 %v361, %v888
          %v890 = vpop.f32.mrf.mxu0
          %v891 = vadd.f32 %v361, %v890
          %892 = vmatmul.bf16.gmra.mxu0 %v597
          %v893 = vpop.f32.mrf.mxu0
          %v894 = vadd.f32 %v361, %v893
          %v895 = vpop.f32.mrf.mxu0
          %v896 = vadd.f32 %v361, %v895
          %897 = vmatmul.bf16.gmra.mxu0 %v599
          %v898 = vpop.f32.mrf.mxu0
          %v899 = vadd.f32 %v361, %v898
          %v900 = vpop.f32.mrf.mxu0
          %v901 = vadd.f32 %v361, %v900
          %902 = vmatmul.bf16.gmra.mxu0 %v601
          %v903 = vpop.f32.mrf.mxu0
          %v904 = vadd.f32 %v361, %v903
          %v905 = vpop.f32.mrf.mxu0
          %v906 = vadd.f32 %v361, %v905
          %907 = vmatmul.bf16.gmra.mxu0 %v603
          %v908 = vpop.f32.mrf.mxu0
          %v909 = vadd.f32 %v361, %v908
          %v910 = vpop.f32.mrf.mxu0
          %v911 = vadd.f32 %v361, %v910
          %912 = vmatmul.bf16.gmra.mxu0 %v605
          %v913 = vpop.f32.mrf.mxu0
          %v914 = vadd.f32 %v361, %v913
          %v915 = vpop.f32.mrf.mxu0
          %v916 = vadd.f32 %v361, %v915
          %917 = vmatmul.bf16.gmra.mxu0 %v607
          %v918 = vpop.f32.mrf.mxu0
          %v919 = vadd.f32 %v361, %v918
          %v920 = vpop.f32.mrf.mxu0
          %v921 = vadd.f32 %v361, %v920
          %922 = vmatmul.bf16.gmra.mxu0 %v609
          %v923 = vpop.f32.mrf.mxu0
          %v924 = vadd.f32 %v361, %v923
          %v925 = vpop.f32.mrf.mxu0
          %v926 = vadd.f32 %v361, %v925
          %927 = vmatmul.bf16.gmra.mxu0 %v611
          %v928 = vpop.f32.mrf.mxu0
          %v929 = vadd.f32 %v361, %v928
          %v930 = vpop.f32.mrf.mxu0
          %v931 = vadd.f32 %v361, %v930
          %932 = vmatmul.bf16.gmra.mxu0 %v613
          %v933 = vpop.f32.mrf.mxu0
          %v934 = vadd.f32 %v361, %v933
          %v935 = vpop.f32.mrf.mxu0
          %v936 = vadd.f32 %v361, %v935
          %937 = vmatmul.bf16.gmra.mxu0 %v615
          %v938 = vpop.f32.mrf.mxu0
          %v939 = vadd.f32 %v361, %v938
          %v940 = vpop.f32.mrf.mxu0
          %v941 = vadd.f32 %v361, %v940
          %942 = vmatmul.bf16.gmra.mxu0 %v617
          %v943 = vpop.f32.mrf.mxu0
          %v944 = vadd.f32 %v361, %v943
          %v945 = vpop.f32.mrf.mxu0
          %v946 = vadd.f32 %v361, %v945
          %947 = vdwg.mxu0
          %948 = vmatpush.bf16.msra.mxu0 %v762
          %949 = vmatpush.bf16.msra.mxu0 %v761
          %950 = vmatpush.bf16.msra.mxu0 %v760
          %951 = vmatpush.bf16.msra.mxu0 %v759
          %952 = vmatpush.bf16.msra.mxu0 %v758
          %953 = vmatpush.bf16.msra.mxu0 %v757
          %954 = vmatpush.bf16.msra.mxu0 %v756
          %955 = vmatpush.bf16.msra.mxu0 %v755
          %956 = vmatmul.bf16.gmra.mxu0 %v556
          %v957 = vpop.f32.mrf.mxu0
          %v958 = vadd.f32 %v789, %v957
          %v959 = vpop.f32.mrf.mxu0
          %v960 = vadd.f32 %v791, %v959
          %961 = vmatmul.bf16.gmra.mxu0 %v558
          %v962 = vpop.f32.mrf.mxu0
          %v963 = vadd.f32 %v794, %v962
          %v964 = vpop.f32.mrf.mxu0
          %v965 = vadd.f32 %v796, %v964
          %966 = vmatmul.bf16.gmra.mxu0 %v560
          %v967 = vpop.f32.mrf.mxu0
          %v968 = vadd.f32 %v799, %v967
          %v969 = vpop.f32.mrf.mxu0
          %v970 = vadd.f32 %v801, %v969
          %971 = vmatmul.bf16.gmra.mxu0 %v562
          %v972 = vpop.f32.mrf.mxu0
          %v973 = vadd.f32 %v804, %v972
          %v974 = vpop.f32.mrf.mxu0
          %v975 = vadd.f32 %v806, %v974
          %976 = vmatmul.bf16.gmra.mxu0 %v564
          %v977 = vpop.f32.mrf.mxu0
          %v978 = vadd.f32 %v809, %v977
          %v979 = vpop.f32.mrf.mxu0
          %v980 = vadd.f32 %v811, %v979
          %981 = vmatmul.bf16.gmra.mxu0 %v566
          %v982 = vpop.f32.mrf.mxu0
          %v983 = vadd.f32 %v814, %v982
          %v984 = vpop.f32.mrf.mxu0
          %v985 = vadd.f32 %v816, %v984
          %986 = vmatmul.bf16.gmra.mxu0 %v568
          %v987 = vpop.f32.mrf.mxu0
          %v988 = vadd.f32 %v819, %v987
          %v989 = vpop.f32.mrf.mxu0
          %v990 = vadd.f32 %v821, %v989
          %991 = vmatmul.bf16.gmra.mxu0 %v570
          %v992 = vpop.f32.mrf.mxu0
          %v993 = vadd.f32 %v824, %v992
          %v994 = vpop.f32.mrf.mxu0
          %v995 = vadd.f32 %v826, %v994
          %996 = vmatmul.bf16.gmra.mxu0 %v572
          %v997 = vpop.f32.mrf.mxu0
          %v998 = vadd.f32 %v829, %v997
          %v999 = vpop.f32.mrf.mxu0
          %v1000 = vadd.f32 %v831, %v999
          %1001 = vmatmul.bf16.gmra.mxu0 %v574
          %v1002 = vpop.f32.mrf.mxu0
          %v1003 = vadd.f32 %v834, %v1002
          %v1004 = vpop.f32.mrf.mxu0
          %v1005 = vadd.f32 %v836, %v1004
          %1006 = vmatmul.bf16.gmra.mxu0 %v576
          %v1007 = vpop.f32.mrf.mxu0
          %v1008 = vadd.f32 %v839, %v1007
          %v1009 = vpop.f32.mrf.mxu0
          %v1010 = vadd.f32 %v841, %v1009
          %1011 = vmatmul.bf16.gmra.mxu0 %v578
          %v1012 = vpop.f32.mrf.mxu0
          %v1013 = vadd.f32 %v844, %v1012
          %v1014 = vpop.f32.mrf.mxu0
          %v1015 = vadd.f32 %v846, %v1014
          %1016 = vmatmul.bf16.gmra.mxu0 %v580
          %v1017 = vpop.f32.mrf.mxu0
          %v1018 = vadd.f32 %v849, %v1017
          %v1019 = vpop.f32.mrf.mxu0
          %v1020 = vadd.f32 %v851, %v1019
          %1021 = vmatmul.bf16.gmra.mxu0 %v582
          %v1022 = vpop.f32.mrf.mxu0
          %v1023 = vadd.f32 %v854, %v1022
          %v1024 = vpop.f32.mrf.mxu0
          %v1025 = vadd.f32 %v856, %v1024
          %1026 = vmatmul.bf16.gmra.mxu0 %v584
          %v1027 = vpop.f32.mrf.mxu0
          %v1028 = vadd.f32 %v859, %v1027
          %v1029 = vpop.f32.mrf.mxu0
          %v1030 = vadd.f32 %v861, %v1029
          %1031 = vmatmul.bf16.gmra.mxu0 %v586
          %v1032 = vpop.f32.mrf.mxu0
          %v1033 = vadd.f32 %v864, %v1032
          %v1034 = vpop.f32.mrf.mxu0
          %v1035 = vadd.f32 %v866, %v1034
          %1036 = vmatmul.bf16.gmra.mxu0 %v588
          %v1037 = vpop.f32.mrf.mxu0
          %v1038 = vadd.f32 %v869, %v1037
          %v1039 = vpop.f32.mrf.mxu0
          %v1040 = vadd.f32 %v871, %v1039
          %1041 = vmatmul.bf16.gmra.mxu0 %v590
          %v1042 = vpop.f32.mrf.mxu0
          %v1043 = vadd.f32 %v874, %v1042
          %v1044 = vpop.f32.mrf.mxu0
          %v1045 = vadd.f32 %v876, %v1044
          %1046 = vmatmul.bf16.gmra.mxu0 %v592
          %v1047 = vpop.f32.mrf.mxu0
          %v1048 = vadd.f32 %v879, %v1047
          %v1049 = vpop.f32.mrf.mxu0
          %v1050 = vadd.f32 %v881, %v1049
          %1051 = vmatmul.bf16.gmra.mxu0 %v594
          %v1052 = vpop.f32.mrf.mxu0
          %v1053 = vadd.f32 %v884, %v1052
          %v1054 = vpop.f32.mrf.mxu0
          %v1055 = vadd.f32 %v886, %v1054
          %1056 = vmatmul.bf16.gmra.mxu0 %v596
          %v1057 = vpop.f32.mrf.mxu0
          %v1058 = vadd.f32 %v889, %v1057
          %v1059 = vpop.f32.mrf.mxu0
          %v1060 = vadd.f32 %v891, %v1059
          %1061 = vmatmul.bf16.gmra.mxu0 %v598
          %v1062 = vpop.f32.mrf.mxu0
          %v1063 = vadd.f32 %v894, %v1062
          %v1064 = vpop.f32.mrf.mxu0
          %v1065 = vadd.f32 %v896, %v1064
          %1066 = vmatmul.bf16.gmra.mxu0 %v600
          %v1067 = vpop.f32.mrf.mxu0
          %v1068 = vadd.f32 %v899, %v1067
          %v1069 = vpop.f32.mrf.mxu0
          %v1070 = vadd.f32 %v901, %v1069
          %1071 = vmatmul.bf16.gmra.mxu0 %v602
          %v1072 = vpop.f32.mrf.mxu0
          %v1073 = vadd.f32 %v904, %v1072
          %v1074 = vpop.f32.mrf.mxu0
          %v1075 = vadd.f32 %v906, %v1074
          %1076 = vmatmul.bf16.gmra.mxu0 %v604
          %v1077 = vpop.f32.mrf.mxu0
          %v1078 = vadd.f32 %v909, %v1077
          %v1079 = vpop.f32.mrf.mxu0
          %v1080 = vadd.f32 %v911, %v1079
          %1081 = vmatmul.bf16.gmra.mxu0 %v606
          %v1082 = vpop.f32.mrf.mxu0
          %v1083 = vadd.f32 %v914, %v1082
          %v1084 = vpop.f32.mrf.mxu0
          %v1085 = vadd.f32 %v916, %v1084
          %1086 = vmatmul.bf16.gmra.mxu0 %v608
          %v1087 = vpop.f32.mrf.mxu0
          %v1088 = vadd.f32 %v919, %v1087
          %v1089 = vpop.f32.mrf.mxu0
          %v1090 = vadd.f32 %v921, %v1089
          %1091 = vmatmul.bf16.gmra.mxu0 %v610
          %v1092 = vpop.f32.mrf.mxu0
          %v1093 = vadd.f32 %v924, %v1092
          %v1094 = vpop.f32.mrf.mxu0
          %v1095 = vadd.f32 %v926, %v1094
          %1096 = vmatmul.bf16.gmra.mxu0 %v612
          %v1097 = vpop.f32.mrf.mxu0
          %v1098 = vadd.f32 %v929, %v1097
          %v1099 = vpop.f32.mrf.mxu0
          %v1100 = vadd.f32 %v931, %v1099
          %1101 = vmatmul.bf16.gmra.mxu0 %v614
          %v1102 = vpop.f32.mrf.mxu0
          %v1103 = vadd.f32 %v934, %v1102
          %v1104 = vpop.f32.mrf.mxu0
          %v1105 = vadd.f32 %v936, %v1104
          %1106 = vmatmul.bf16.gmra.mxu0 %v616
          %v1107 = vpop.f32.mrf.mxu0
          %v1108 = vadd.f32 %v939, %v1107
          %v1109 = vpop.f32.mrf.mxu0
          %v1110 = vadd.f32 %v941, %v1109
          %1111 = vmatmul.bf16.gmra.mxu0 %v618
          %v1112 = vpop.f32.mrf.mxu0
          %v1113 = vadd.f32 %v944, %v1112
          %v1114 = vpop.f32.mrf.mxu0
          %v1115 = vadd.f32 %v946, %v1114
          %1116 = vdwg.mxu0
          %s1117 = scalar_lea.vmem [#allocation2], %s258
          %1118 = vst [vmem:[%s1117] sm:$0xff] %v958
          %1119 = vst [vmem:[%s1117 + $0x8] sm:$0xff] %v960
          %1120 = vst [vmem:[%s1117 + $0x10] sm:$0xff] %v963
          %1121 = vst [vmem:[%s1117 + $0x18] sm:$0xff] %v965
          %1122 = vst [vmem:[%s1117 + $0x20] sm:$0xff] %v968
          %1123 = vst [vmem:[%s1117 + $0x28] sm:$0xff] %v970
          %1124 = vst [vmem:[%s1117 + $0x30] sm:$0xff] %v973
          %1125 = vst [vmem:[%s1117 + $0x38] sm:$0xff] %v975
          %1126 = vst [vmem:[%s1117 + $0x40] sm:$0xff] %v978
          %1127 = vst [vmem:[%s1117 + $0x48] sm:$0xff] %v980
          %1128 = vst [vmem:[%s1117 + $0x50] sm:$0xff] %v983
          %1129 = vst [vmem:[%s1117 + $0x58] sm:$0xff] %v985
          %1130 = vst [vmem:[%s1117 + $0x60] sm:$0xff] %v988
          %1131 = vst [vmem:[%s1117 + $0x68] sm:$0xff] %v990
          %1132 = vst [vmem:[%s1117 + $0x70] sm:$0xff] %v993
          %1133 = vst [vmem:[%s1117 + $0x78] sm:$0xff] %v995
          %1134 = vst [vmem:[%s1117 + $0x80] sm:$0xff] %v998
          %1135 = vst [vmem:[%s1117 + $0x88] sm:$0xff] %v1000
          %1136 = vst [vmem:[%s1117 + $0x90] sm:$0xff] %v1003
          %1137 = vst [vmem:[%s1117 + $0x98] sm:$0xff] %v1005
          %1138 = vst [vmem:[%s1117 + $0xa0] sm:$0xff] %v1008
          %1139 = vst [vmem:[%s1117 + $0xa8] sm:$0xff] %v1010
          %1140 = vst [vmem:[%s1117 + $0xb0] sm:$0xff] %v1013
          %1141 = vst [vmem:[%s1117 + $0xb8] sm:$0xff] %v1015
          %1142 = vst [vmem:[%s1117 + $0xc0] sm:$0xff] %v1018
          %1143 = vst [vmem:[%s1117 + $0xc8] sm:$0xff] %v1020
          %1144 = vst [vmem:[%s1117 + $0xd0] sm:$0xff] %v1023
          %1145 = vst [vmem:[%s1117 + $0xd8] sm:$0xff] %v1025
          %1146 = vst [vmem:[%s1117 + $0xe0] sm:$0xff] %v1028
          %1147 = vst [vmem:[%s1117 + $0xe8] sm:$0xff] %v1030
          %1148 = vst [vmem:[%s1117 + $0xf0] sm:$0xff] %v1033
          %1149 = vst [vmem:[%s1117 + $0xf8] sm:$0xff] %v1035
          %1150 = vst [vmem:[%s1117 + $0x100] sm:$0xff] %v1038
          %1151 = vst [vmem:[%s1117 + $0x108] sm:$0xff] %v1040
          %1152 = vst [vmem:[%s1117 + $0x110] sm:$0xff] %v1043
          %1153 = vst [vmem:[%s1117 + $0x118] sm:$0xff] %v1045
          %1154 = vst [vmem:[%s1117 + $0x120] sm:$0xff] %v1048
          %1155 = vst [vmem:[%s1117 + $0x128] sm:$0xff] %v1050
          %1156 = vst [vmem:[%s1117 + $0x130] sm:$0xff] %v1053
          %1157 = vst [vmem:[%s1117 + $0x138] sm:$0xff] %v1055
          %1158 = vst [vmem:[%s1117 + $0x140] sm:$0xff] %v1058
          %1159 = vst [vmem:[%s1117 + $0x148] sm:$0xff] %v1060
          %1160 = vst [vmem:[%s1117 + $0x150] sm:$0xff] %v1063
          %1161 = vst [vmem:[%s1117 + $0x158] sm:$0xff] %v1065
          %1162 = vst [vmem:[%s1117 + $0x160] sm:$0xff] %v1068
          %1163 = vst [vmem:[%s1117 + $0x168] sm:$0xff] %v1070
          %1164 = vst [vmem:[%s1117 + $0x170] sm:$0xff] %v1073
          %1165 = vst [vmem:[%s1117 + $0x178] sm:$0xff] %v1075
          %1166 = vst [vmem:[%s1117 + $0x180] sm:$0xff] %v1078
          %1167 = vst [vmem:[%s1117 + $0x188] sm:$0xff] %v1080
          %1168 = vst [vmem:[%s1117 + $0x190] sm:$0xff] %v1083
          %1169 = vst [vmem:[%s1117 + $0x198] sm:$0xff] %v1085
          %1170 = vst [vmem:[%s1117 + $0x1a0] sm:$0xff] %v1088
          %1171 = vst [vmem:[%s1117 + $0x1a8] sm:$0xff] %v1090
          %1172 = vst [vmem:[%s1117 + $0x1b0] sm:$0xff] %v1093
          %1173 = vst [vmem:[%s1117 + $0x1b8] sm:$0xff] %v1095
          %1174 = vst [vmem:[%s1117 + $0x1c0] sm:$0xff] %v1098
          %1175 = vst [vmem:[%s1117 + $0x1c8] sm:$0xff] %v1100
          %1176 = vst [vmem:[%s1117 + $0x1d0] sm:$0xff] %v1103
          %1177 = vst [vmem:[%s1117 + $0x1d8] sm:$0xff] %v1105
          %1178 = vst [vmem:[%s1117 + $0x1e0] sm:$0xff] %v1108
          %1179 = vst [vmem:[%s1117 + $0x1e8] sm:$0xff] %v1110
          %1180 = vst [vmem:[%s1117 + $0x1f0] sm:$0xff] %v1113
          %1181 = vst [vmem:[%s1117 + $0x1f8] sm:$0xff] %v1115
          %v1182 = vlaneseq
          %v1183 = vshrl.u32 %v1182, 7
          %v1184 = vadd.s32 %v1183, 8
          %v1185 = vadd.s32 %v1183, 16
          %v1186 = vadd.s32 %v1183, 24
          %v1187 = vadd.s32 %v1183, 32
          %v1188 = vadd.s32 %v1183, 40
          %v1189 = vadd.s32 %v1183, 48
          %v1190 = vadd.s32 %v1183, 56
          %v1191 = vadd.s32 %v1183, 64
          %v1192 = vadd.s32 %v1183, 72
          %v1193 = vadd.s32 %v1183, 80
          %v1194 = vadd.s32 %v1183, 88
          %v1195 = vadd.s32 %v1183, 96
          %v1196 = vadd.s32 %v1183, 104
          %v1197 = vadd.s32 %v1183, 112
          %v1198 = vadd.s32 %v1183, 120
          %v1199 = vadd.s32 %v1183, 128
          %v1200 = vadd.s32 %v1183, 136
          %v1201 = vadd.s32 %v1183, 144
          %v1202 = vadd.s32 %v1183, 152
          %v1203 = vadd.s32 %v1183, 160
          %v1204 = vadd.s32 %v1183, 168
          %v1205 = vadd.s32 %v1183, 176
          %v1206 = vadd.s32 %v1183, 184
          %v1207 = vadd.s32 %v1183, 192
          %v1208 = vadd.s32 %v1183, 200
          %v1209 = vadd.s32 %v1183, 208
          %v1210 = vadd.s32 %v1183, 216
          %v1211 = vadd.s32 %v1183, 224
          %v1212 = vadd.s32 %v1183, 232
          %v1213 = vadd.s32 %v1183, 240
          %v1214 = vadd.s32 %v1183, 248
          %v1215 = vadd.s32 %v1183, 256
          %v1216 = vadd.s32 %v1183, 264
          %v1217 = vadd.s32 %v1183, 272
          %v1218 = vadd.s32 %v1183, 280
          %v1219 = vadd.s32 %v1183, 288
          %v1220 = vadd.s32 %v1183, 296
          %v1221 = vadd.s32 %v1183, 304
          %v1222 = vadd.s32 %v1183, 312
          %v1223 = vadd.s32 %v1183, 320
          %v1224 = vadd.s32 %v1183, 328
          %v1225 = vadd.s32 %v1183, 336
          %v1226 = vadd.s32 %v1183, 344
          %v1227 = vadd.s32 %v1183, 352
          %v1228 = vadd.s32 %v1183, 360
          %v1229 = vadd.s32 %v1183, 368
          %v1230 = vadd.s32 %v1183, 376
          %v1231 = vadd.s32 %v1183, 384
          %v1232 = vadd.s32 %v1183, 392
          %v1233 = vadd.s32 %v1183, 400
          %v1234 = vadd.s32 %v1183, 408
          %v1235 = vadd.s32 %v1183, 416
          %v1236 = vadd.s32 %v1183, 424
          %v1237 = vadd.s32 %v1183, 432
          %v1238 = vadd.s32 %v1183, 440
          %v1239 = vadd.s32 %v1183, 448
          %v1240 = vadd.s32 %v1183, 456
          %v1241 = vadd.s32 %v1183, 464
          %v1242 = vadd.s32 %v1183, 472
          %v1243 = vadd.s32 %v1183, 480
          %v1244 = vadd.s32 %v1183, 488
          %v1245 = vadd.s32 %v1183, 496
          %v1246 = vadd.s32 %v1183, 504
          %v1247 = vstv %s258
          %v1248 = vadd.s32 %v1247, %v1183
          %v1249 = vadd.s32 %v1247, %v1184
          %v1250 = vadd.s32 %v1247, %v1185
          %v1251 = vadd.s32 %v1247, %v1186
          %v1252 = vadd.s32 %v1247, %v1187
          %v1253 = vadd.s32 %v1247, %v1188
          %v1254 = vadd.s32 %v1247, %v1189
          %v1255 = vadd.s32 %v1247, %v1190
          %v1256 = vadd.s32 %v1247, %v1191
          %v1257 = vadd.s32 %v1247, %v1192
          %v1258 = vadd.s32 %v1247, %v1193
          %v1259 = vadd.s32 %v1247, %v1194
          %v1260 = vadd.s32 %v1247, %v1195
          %v1261 = vadd.s32 %v1247, %v1196
          %v1262 = vadd.s32 %v1247, %v1197
          %v1263 = vadd.s32 %v1247, %v1198
          %v1264 = vadd.s32 %v1247, %v1199
          %v1265 = vadd.s32 %v1247, %v1200
          %v1266 = vadd.s32 %v1247, %v1201
          %v1267 = vadd.s32 %v1247, %v1202
          %v1268 = vadd.s32 %v1247, %v1203
          %v1269 = vadd.s32 %v1247, %v1204
          %v1270 = vadd.s32 %v1247, %v1205
          %v1271 = vadd.s32 %v1247, %v1206
          %v1272 = vadd.s32 %v1247, %v1207
          %v1273 = vadd.s32 %v1247, %v1208
          %v1274 = vadd.s32 %v1247, %v1209
          %v1275 = vadd.s32 %v1247, %v1210
          %v1276 = vadd.s32 %v1247, %v1211
          %v1277 = vadd.s32 %v1247, %v1212
          %v1278 = vadd.s32 %v1247, %v1213
          %v1279 = vadd.s32 %v1247, %v1214
          %v1280 = vadd.s32 %v1247, %v1215
          %v1281 = vadd.s32 %v1247, %v1216
          %v1282 = vadd.s32 %v1247, %v1217
          %v1283 = vadd.s32 %v1247, %v1218
          %v1284 = vadd.s32 %v1247, %v1219
          %v1285 = vadd.s32 %v1247, %v1220
          %v1286 = vadd.s32 %v1247, %v1221
          %v1287 = vadd.s32 %v1247, %v1222
          %v1288 = vadd.s32 %v1247, %v1223
          %v1289 = vadd.s32 %v1247, %v1224
          %v1290 = vadd.s32 %v1247, %v1225
          %v1291 = vadd.s32 %v1247, %v1226
          %v1292 = vadd.s32 %v1247, %v1227
          %v1293 = vadd.s32 %v1247, %v1228
          %v1294 = vadd.s32 %v1247, %v1229
          %v1295 = vadd.s32 %v1247, %v1230
          %v1296 = vadd.s32 %v1247, %v1231
          %v1297 = vadd.s32 %v1247, %v1232
          %v1298 = vadd.s32 %v1247, %v1233
          %v1299 = vadd.s32 %v1247, %v1234
          %v1300 = vadd.s32 %v1247, %v1235
          %v1301 = vadd.s32 %v1247, %v1236
          %v1302 = vadd.s32 %v1247, %v1237
          %v1303 = vadd.s32 %v1247, %v1238
          %v1304 = vadd.s32 %v1247, %v1239
          %v1305 = vadd.s32 %v1247, %v1240
          %v1306 = vadd.s32 %v1247, %v1241
          %v1307 = vadd.s32 %v1247, %v1242
          %v1308 = vadd.s32 %v1247, %v1243
          %v1309 = vadd.s32 %v1247, %v1244
          %v1310 = vadd.s32 %v1247, %v1245
          %v1311 = vadd.s32 %v1247, %v1246
          %vm1312 = vcmp.lt.s32.totalorder %v1248, 1024
          %vm1313 = vcmp.lt.s32.totalorder %v1249, 1024
          %vm1314 = vcmp.lt.s32.totalorder %v1250, 1024
          %vm1315 = vcmp.lt.s32.totalorder %v1251, 1024
          %vm1316 = vcmp.lt.s32.totalorder %v1252, 1024
          %vm1317 = vcmp.lt.s32.totalorder %v1253, 1024
          %vm1318 = vcmp.lt.s32.totalorder %v1254, 1024
          %vm1319 = vcmp.lt.s32.totalorder %v1255, 1024
          %vm1320 = vcmp.lt.s32.totalorder %v1256, 1024
          %vm1321 = vcmp.lt.s32.totalorder %v1257, 1024
          %vm1322 = vcmp.lt.s32.totalorder %v1258, 1024
          %vm1323 = vcmp.lt.s32.totalorder %v1259, 1024
          %vm1324 = vcmp.lt.s32.totalorder %v1260, 1024
          %vm1325 = vcmp.lt.s32.totalorder %v1261, 1024
          %vm1326 = vcmp.lt.s32.totalorder %v1262, 1024
          %vm1327 = vcmp.lt.s32.totalorder %v1263, 1024
          %vm1328 = vcmp.lt.s32.totalorder %v1264, 1024
          %vm1329 = vcmp.lt.s32.totalorder %v1265, 1024
          %vm1330 = vcmp.lt.s32.totalorder %v1266, 1024
          %vm1331 = vcmp.lt.s32.totalorder %v1267, 1024
          %vm1332 = vcmp.lt.s32.totalorder %v1268, 1024
          %vm1333 = vcmp.lt.s32.totalorder %v1269, 1024
          %vm1334 = vcmp.lt.s32.totalorder %v1270, 1024
          %vm1335 = vcmp.lt.s32.totalorder %v1271, 1024
          %vm1336 = vcmp.lt.s32.totalorder %v1272, 1024
          %vm1337 = vcmp.lt.s32.totalorder %v1273, 1024
          %vm1338 = vcmp.lt.s32.totalorder %v1274, 1024
          %vm1339 = vcmp.lt.s32.totalorder %v1275, 1024
          %vm1340 = vcmp.lt.s32.totalorder %v1276, 1024
          %vm1341 = vcmp.lt.s32.totalorder %v1277, 1024
          %vm1342 = vcmp.lt.s32.totalorder %v1278, 1024
          %vm1343 = vcmp.lt.s32.totalorder %v1279, 1024
          %vm1344 = vcmp.lt.s32.totalorder %v1280, 1024
          %vm1345 = vcmp.lt.s32.totalorder %v1281, 1024
          %vm1346 = vcmp.lt.s32.totalorder %v1282, 1024
          %vm1347 = vcmp.lt.s32.totalorder %v1283, 1024
          %vm1348 = vcmp.lt.s32.totalorder %v1284, 1024
          %vm1349 = vcmp.lt.s32.totalorder %v1285, 1024
          %vm1350 = vcmp.lt.s32.totalorder %v1286, 1024
          %vm1351 = vcmp.lt.s32.totalorder %v1287, 1024
          %vm1352 = vcmp.lt.s32.totalorder %v1288, 1024
          %vm1353 = vcmp.lt.s32.totalorder %v1289, 1024
          %vm1354 = vcmp.lt.s32.totalorder %v1290, 1024
          %vm1355 = vcmp.lt.s32.totalorder %v1291, 1024
          %vm1356 = vcmp.lt.s32.totalorder %v1292, 1024
          %vm1357 = vcmp.lt.s32.totalorder %v1293, 1024
          %vm1358 = vcmp.lt.s32.totalorder %v1294, 1024
          %vm1359 = vcmp.lt.s32.totalorder %v1295, 1024
          %vm1360 = vcmp.lt.s32.totalorder %v1296, 1024
          %vm1361 = vcmp.lt.s32.totalorder %v1297, 1024
          %vm1362 = vcmp.lt.s32.totalorder %v1298, 1024
          %vm1363 = vcmp.lt.s32.totalorder %v1299, 1024
          %vm1364 = vcmp.lt.s32.totalorder %v1300, 1024
          %vm1365 = vcmp.lt.s32.totalorder %v1301, 1024
          %vm1366 = vcmp.lt.s32.totalorder %v1302, 1024
          %vm1367 = vcmp.lt.s32.totalorder %v1303, 1024
          %vm1368 = vcmp.lt.s32.totalorder %v1304, 1024
          %vm1369 = vcmp.lt.s32.totalorder %v1305, 1024
          %vm1370 = vcmp.lt.s32.totalorder %v1306, 1024
          %vm1371 = vcmp.lt.s32.totalorder %v1307, 1024
          %vm1372 = vcmp.lt.s32.totalorder %v1308, 1024
          %vm1373 = vcmp.lt.s32.totalorder %v1309, 1024
          %vm1374 = vcmp.lt.s32.totalorder %v1310, 1024
          %vm1375 = vcmp.lt.s32.totalorder %v1311, 1024
          %v1376 = vsel %vm1312, %v958, 0.0
          %v1377 = vsel %vm1313, %v960, 0.0
          %v1378 = vsel %vm1314, %v963, 0.0
          %v1379 = vsel %vm1315, %v965, 0.0
          %v1380 = vsel %vm1316, %v968, 0.0
          %v1381 = vsel %vm1317, %v970, 0.0
          %v1382 = vsel %vm1318, %v973, 0.0
          %v1383 = vsel %vm1319, %v975, 0.0
          %v1384 = vsel %vm1320, %v978, 0.0
          %v1385 = vsel %vm1321, %v980, 0.0
          %v1386 = vsel %vm1322, %v983, 0.0
          %v1387 = vsel %vm1323, %v985, 0.0
          %v1388 = vsel %vm1324, %v988, 0.0
          %v1389 = vsel %vm1325, %v990, 0.0
          %v1390 = vsel %vm1326, %v993, 0.0
          %v1391 = vsel %vm1327, %v995, 0.0
          %v1392 = vsel %vm1328, %v998, 0.0
          %v1393 = vsel %vm1329, %v1000, 0.0
          %v1394 = vsel %vm1330, %v1003, 0.0
          %v1395 = vsel %vm1331, %v1005, 0.0
          %v1396 = vsel %vm1332, %v1008, 0.0
          %v1397 = vsel %vm1333, %v1010, 0.0
          %v1398 = vsel %vm1334, %v1013, 0.0
          %v1399 = vsel %vm1335, %v1015, 0.0
          %v1400 = vsel %vm1336, %v1018, 0.0
          %v1401 = vsel %vm1337, %v1020, 0.0
          %v1402 = vsel %vm1338, %v1023, 0.0
          %v1403 = vsel %vm1339, %v1025, 0.0
          %v1404 = vsel %vm1340, %v1028, 0.0
          %v1405 = vsel %vm1341, %v1030, 0.0
          %v1406 = vsel %vm1342, %v1033, 0.0
          %v1407 = vsel %vm1343, %v1035, 0.0
          %v1408 = vsel %vm1344, %v1038, 0.0
          %v1409 = vsel %vm1345, %v1040, 0.0
          %v1410 = vsel %vm1346, %v1043, 0.0
          %v1411 = vsel %vm1347, %v1045, 0.0
          %v1412 = vsel %vm1348, %v1048, 0.0
          %v1413 = vsel %vm1349, %v1050, 0.0
          %v1414 = vsel %vm1350, %v1053, 0.0
          %v1415 = vsel %vm1351, %v1055, 0.0
          %v1416 = vsel %vm1352, %v1058, 0.0
          %v1417 = vsel %vm1353, %v1060, 0.0
          %v1418 = vsel %vm1354, %v1063, 0.0
          %v1419 = vsel %vm1355, %v1065, 0.0
          %v1420 = vsel %vm1356, %v1068, 0.0
          %v1421 = vsel %vm1357, %v1070, 0.0
          %v1422 = vsel %vm1358, %v1073, 0.0
          %v1423 = vsel %vm1359, %v1075, 0.0
          %v1424 = vsel %vm1360, %v1078, 0.0
          %v1425 = vsel %vm1361, %v1080, 0.0
          %v1426 = vsel %vm1362, %v1083, 0.0
          %v1427 = vsel %vm1363, %v1085, 0.0
          %v1428 = vsel %vm1364, %v1088, 0.0
          %v1429 = vsel %vm1365, %v1090, 0.0
          %v1430 = vsel %vm1366, %v1093, 0.0
          %v1431 = vsel %vm1367, %v1095, 0.0
          %v1432 = vsel %vm1368, %v1098, 0.0
          %v1433 = vsel %vm1369, %v1100, 0.0
          %v1434 = vsel %vm1370, %v1103, 0.0
          %v1435 = vsel %vm1371, %v1105, 0.0
          %v1436 = vsel %vm1372, %v1108, 0.0
          %v1437 = vsel %vm1373, %v1110, 0.0
          %v1438 = vsel %vm1374, %v1113, 0.0
          %v1439 = vsel %vm1375, %v1115, 0.0
          %p1440 = scmp.eq.s32.totalorder %s24, 0
          // Predicated region
          $region45: #{down_block_bn_forward.1} parent=43 // pred_check
            %p1441 = pneg %p1440
          $region46: #{down_block_bn_forward.1} parent=43 // pred_check_branch
            %1443 = sbr.rel (%p1441) target = $region48
          $region47: #{down_block_bn_forward.1} parent=43 // pred_region
            %1444 = vst [vmem:[#allocation3] sm:$0x1] 0.0
            %1445 = vst [vmem:[#allocation4] sm:$0x1] 0.0
          $region48: #{down_block_bn_forward.1} parent=43 // pred_fallthru
            _
          %v1446 = vld [vmem:[#allocation3] sm:$0x1]
          %v1447 = vadd.f32 %v1376, %v1377
          %v1448 = vadd.f32 %v1447, %v1378
          %v1449 = vadd.f32 %v1448, %v1379
          %v1450 = vadd.f32 %v1449, %v1380
          %v1451 = vadd.f32 %v1450, %v1381
          %v1452 = vadd.f32 %v1451, %v1382
          %v1453 = vadd.f32 %v1452, %v1383
          %v1454 = vadd.f32 %v1453, %v1384
          %v1455 = vadd.f32 %v1454, %v1385
          %v1456 = vadd.f32 %v1455, %v1386
          %v1457 = vadd.f32 %v1456, %v1387
          %v1458 = vadd.f32 %v1457, %v1388
          %v1459 = vadd.f32 %v1458, %v1389
          %v1460 = vadd.f32 %v1459, %v1390
          %v1461 = vadd.f32 %v1460, %v1391
          %v1462 = vadd.f32 %v1461, %v1392
          %v1463 = vadd.f32 %v1462, %v1393
          %v1464 = vadd.f32 %v1463, %v1394
          %v1465 = vadd.f32 %v1464, %v1395
          %v1466 = vadd.f32 %v1465, %v1396
          %v1467 = vadd.f32 %v1466, %v1397
          %v1468 = vadd.f32 %v1467, %v1398
          %v1469 = vadd.f32 %v1468, %v1399
          %v1470 = vadd.f32 %v1469, %v1400
          %v1471 = vadd.f32 %v1470, %v1401
          %v1472 = vadd.f32 %v1471, %v1402
          %v1473 = vadd.f32 %v1472, %v1403
          %v1474 = vadd.f32 %v1473, %v1404
          %v1475 = vadd.f32 %v1474, %v1405
          %v1476 = vadd.f32 %v1475, %v1406
          %v1477 = vadd.f32 %v1476, %v1407
          %v1478 = vadd.f32 %v1477, %v1408
          %v1479 = vadd.f32 %v1478, %v1409
          %v1480 = vadd.f32 %v1479, %v1410
          %v1481 = vadd.f32 %v1480, %v1411
          %v1482 = vadd.f32 %v1481, %v1412
          %v1483 = vadd.f32 %v1482, %v1413
          %v1484 = vadd.f32 %v1483, %v1414
          %v1485 = vadd.f32 %v1484, %v1415
          %v1486 = vadd.f32 %v1485, %v1416
          %v1487 = vadd.f32 %v1486, %v1417
          %v1488 = vadd.f32 %v1487, %v1418
          %v1489 = vadd.f32 %v1488, %v1419
          %v1490 = vadd.f32 %v1489, %v1420
          %v1491 = vadd.f32 %v1490, %v1421
          %v1492 = vadd.f32 %v1491, %v1422
          %v1493 = vadd.f32 %v1492, %v1423
          %v1494 = vadd.f32 %v1493, %v1424
          %v1495 = vadd.f32 %v1494, %v1425
          %v1496 = vadd.f32 %v1495, %v1426
          %v1497 = vadd.f32 %v1496, %v1427
          %v1498 = vadd.f32 %v1497, %v1428
          %v1499 = vadd.f32 %v1498, %v1429
          %v1500 = vadd.f32 %v1499, %v1430
          %v1501 = vadd.f32 %v1500, %v1431
          %v1502 = vadd.f32 %v1501, %v1432
          %v1503 = vadd.f32 %v1502, %v1433
          %v1504 = vadd.f32 %v1503, %v1434
          %v1505 = vadd.f32 %v1504, %v1435
          %v1506 = vadd.f32 %v1505, %v1436
          %v1507 = vadd.f32 %v1506, %v1437
          %v1508 = vadd.f32 %v1507, %v1438
          %v1509 = vadd.f32 %v1508, %v1439
          %v1510 = vrot.slane %v1509, 4
          %v1511 = vadd.f32 %v1509, %v1510
          %v1512 = vrot.slane %v1511, 2
          %v1513 = vadd.f32 %v1511, %v1512
          %v1514 = vrot.slane %v1513, 1
          %v1515 = vadd.f32 %v1513, %v1514
          %v1516 = vadd.f32 %v1446, %v1515
          %1517 = vst [vmem:[#allocation3] sm:$0x1] %v1516
          %v1518 = vld [vmem:[#allocation4] sm:$0x1]
          %v1519 = vmul.f32 %v1376, %v1376
          %v1520 = vmul.f32 %v1377, %v1377
          %v1521 = vmul.f32 %v1378, %v1378
          %v1522 = vmul.f32 %v1379, %v1379
          %v1523 = vmul.f32 %v1380, %v1380
          %v1524 = vmul.f32 %v1381, %v1381
          %v1525 = vmul.f32 %v1382, %v1382
          %v1526 = vmul.f32 %v1383, %v1383
          %v1527 = vmul.f32 %v1384, %v1384
          %v1528 = vmul.f32 %v1385, %v1385
          %v1529 = vmul.f32 %v1386, %v1386
          %v1530 = vmul.f32 %v1387, %v1387
          %v1531 = vmul.f32 %v1388, %v1388
          %v1532 = vmul.f32 %v1389, %v1389
          %v1533 = vmul.f32 %v1390, %v1390
          %v1534 = vmul.f32 %v1391, %v1391
          %v1535 = vmul.f32 %v1392, %v1392
          %v1536 = vmul.f32 %v1393, %v1393
          %v1537 = vmul.f32 %v1394, %v1394
          %v1538 = vmul.f32 %v1395, %v1395
          %v1539 = vmul.f32 %v1396, %v1396
          %v1540 = vmul.f32 %v1397, %v1397
          %v1541 = vmul.f32 %v1398, %v1398
          %v1542 = vmul.f32 %v1399, %v1399
          %v1543 = vmul.f32 %v1400, %v1400
          %v1544 = vmul.f32 %v1401, %v1401
          %v1545 = vmul.f32 %v1402, %v1402
          %v1546 = vmul.f32 %v1403, %v1403
          %v1547 = vmul.f32 %v1404, %v1404
          %v1548 = vmul.f32 %v1405, %v1405
          %v1549 = vmul.f32 %v1406, %v1406
          %v1550 = vmul.f32 %v1407, %v1407
          %v1551 = vmul.f32 %v1408, %v1408
          %v1552 = vmul.f32 %v1409, %v1409
          %v1553 = vmul.f32 %v1410, %v1410
          %v1554 = vmul.f32 %v1411, %v1411
          %v1555 = vmul.f32 %v1412, %v1412
          %v1556 = vmul.f32 %v1413, %v1413
          %v1557 = vmul.f32 %v1414, %v1414
          %v1558 = vmul.f32 %v1415, %v1415
          %v1559 = vmul.f32 %v1416, %v1416
          %v1560 = vmul.f32 %v1417, %v1417
          %v1561 = vmul.f32 %v1418, %v1418
          %v1562 = vmul.f32 %v1419, %v1419
          %v1563 = vmul.f32 %v1420, %v1420
          %v1564 = vmul.f32 %v1421, %v1421
          %v1565 = vmul.f32 %v1422, %v1422
          %v1566 = vmul.f32 %v1423, %v1423
          %v1567 = vmul.f32 %v1424, %v1424
          %v1568 = vmul.f32 %v1425, %v1425
          %v1569 = vmul.f32 %v1426, %v1426
          %v1570 = vmul.f32 %v1427, %v1427
          %v1571 = vmul.f32 %v1428, %v1428
          %v1572 = vmul.f32 %v1429, %v1429
          %v1573 = vmul.f32 %v1430, %v1430
          %v1574 = vmul.f32 %v1431, %v1431
          %v1575 = vmul.f32 %v1432, %v1432
          %v1576 = vmul.f32 %v1433, %v1433
          %v1577 = vmul.f32 %v1434, %v1434
          %v1578 = vmul.f32 %v1435, %v1435
          %v1579 = vmul.f32 %v1436, %v1436
          %v1580 = vmul.f32 %v1437, %v1437
          %v1581 = vmul.f32 %v1438, %v1438
          %v1582 = vmul.f32 %v1439, %v1439
          %v1583 = vadd.f32 %v1519, %v1520
          %v1584 = vadd.f32 %v1583, %v1521
          %v1585 = vadd.f32 %v1584, %v1522
          %v1586 = vadd.f32 %v1585, %v1523
          %v1587 = vadd.f32 %v1586, %v1524
          %v1588 = vadd.f32 %v1587, %v1525
          %v1589 = vadd.f32 %v1588, %v1526
          %v1590 = vadd.f32 %v1589, %v1527
          %v1591 = vadd.f32 %v1590, %v1528
          %v1592 = vadd.f32 %v1591, %v1529
          %v1593 = vadd.f32 %v1592, %v1530
          %v1594 = vadd.f32 %v1593, %v1531
          %v1595 = vadd.f32 %v1594, %v1532
          %v1596 = vadd.f32 %v1595, %v1533
          %v1597 = vadd.f32 %v1596, %v1534
          %v1598 = vadd.f32 %v1597, %v1535
          %v1599 = vadd.f32 %v1598, %v1536
          %v1600 = vadd.f32 %v1599, %v1537
          %v1601 = vadd.f32 %v1600, %v1538
          %v1602 = vadd.f32 %v1601, %v1539
          %v1603 = vadd.f32 %v1602, %v1540
          %v1604 = vadd.f32 %v1603, %v1541
          %v1605 = vadd.f32 %v1604, %v1542
          %v1606 = vadd.f32 %v1605, %v1543
          %v1607 = vadd.f32 %v1606, %v1544
          %v1608 = vadd.f32 %v1607, %v1545
          %v1609 = vadd.f32 %v1608, %v1546
          %v1610 = vadd.f32 %v1609, %v1547
          %v1611 = vadd.f32 %v1610, %v1548
          %v1612 = vadd.f32 %v1611, %v1549
          %v1613 = vadd.f32 %v1612, %v1550
          %v1614 = vadd.f32 %v1613, %v1551
          %v1615 = vadd.f32 %v1614, %v1552
          %v1616 = vadd.f32 %v1615, %v1553
          %v1617 = vadd.f32 %v1616, %v1554
          %v1618 = vadd.f32 %v1617, %v1555
          %v1619 = vadd.f32 %v1618, %v1556
          %v1620 = vadd.f32 %v1619, %v1557
          %v1621 = vadd.f32 %v1620, %v1558
          %v1622 = vadd.f32 %v1621, %v1559
          %v1623 = vadd.f32 %v1622, %v1560
          %v1624 = vadd.f32 %v1623, %v1561
          %v1625 = vadd.f32 %v1624, %v1562
          %v1626 = vadd.f32 %v1625, %v1563
          %v1627 = vadd.f32 %v1626, %v1564
          %v1628 = vadd.f32 %v1627, %v1565
          %v1629 = vadd.f32 %v1628, %v1566
          %v1630 = vadd.f32 %v1629, %v1567
          %v1631 = vadd.f32 %v1630, %v1568
          %v1632 = vadd.f32 %v1631, %v1569
          %v1633 = vadd.f32 %v1632, %v1570
          %v1634 = vadd.f32 %v1633, %v1571
          %v1635 = vadd.f32 %v1634, %v1572
          %v1636 = vadd.f32 %v1635, %v1573
          %v1637 = vadd.f32 %v1636, %v1574
          %v1638 = vadd.f32 %v1637, %v1575
          %v1639 = vadd.f32 %v1638, %v1576
          %v1640 = vadd.f32 %v1639, %v1577
          %v1641 = vadd.f32 %v1640, %v1578
          %v1642 = vadd.f32 %v1641, %v1579
          %v1643 = vadd.f32 %v1642, %v1580
          %v1644 = vadd.f32 %v1643, %v1581
          %v1645 = vadd.f32 %v1644, %v1582
          %v1646 = vrot.slane %v1645, 4
          %v1647 = vadd.f32 %v1645, %v1646
          %v1648 = vrot.slane %v1647, 2
          %v1649 = vadd.f32 %v1647, %v1648
          %v1650 = vrot.slane %v1649, 1
          %v1651 = vadd.f32 %v1649, %v1650
          %v1652 = vadd.f32 %v1518, %v1651
          %1653 = vst [vmem:[#allocation4] sm:$0x1] %v1652
          %p1654 = scmp.eq.s32.totalorder %s24, 1
          // Predicated region
          $region49: #{down_block_bn_forward.1} parent=43 // pred_check
            %p1655 = pneg %p1654
          $region50: #{down_block_bn_forward.1} parent=43 // pred_check_branch
            %1657 = sbr.rel (%p1655) target = $region52
          $region51: #{down_block_bn_forward.1} parent=43 // pred_region
            %v1658 = vld [vmem:[#allocation3] sm:$0x1]
            %v1659 = vmul.f32 %v1658, 0.0009765625
            %v1660 = vld [vmem:[#allocation4] sm:$0x1]
            %v1661 = vmul.f32 %v1660, 0.0009765625
            %v1662 = vmul.f32 %v1659, %v1659
            %v1663 = vsub.f32 %v1661, %v1662
            %v1664 = vmax.f32 %v1663, 0.0
            %v1665 = vld [vmem:[%s3] sm:$0x1]
            %v1666 = vadd.f32 %v1664, 1e-05
            %v1667 = vrsqrt.pop %v1666
            %v1668 = vmul.f32 %v1667, %v1666
            %v1669 = vmul.f32 %v1668, %v1667
            %v1670 = vmul.f32 0.5, %v1669
            %v1671 = vsub.f32 1.5, %v1670
            %v1672 = vmul.f32 %v1667, %v1671
            %vm1673 = vweird.f32 %v1666
            %vm1674 = vweird.f32 %v1667
            %vm1675 = vmor %vm1673, %vm1674
            %v1676 = vsel %vm1675, %v1667, %v1672
            %v1677 = vmul.f32 %v1665, %v1676
            %v1678 = vld [vmem:[%s4] sm:$0x1]
            %v1679 = vmul.f32 %v1659, %v1677
            %v1680 = vsub.f32 %v1678, %v1679
            %1681 = vst [vmem:[#allocation3] sm:$0x1] %v1677
            %1682 = vst [vmem:[#allocation4] sm:$0x1] %v1680
          $region52: #{down_block_bn_forward.1} parent=43 // pred_fallthru
            _
        $region44: #{down_block_bn_forward.1} parent=39 // pred_fallthru
          _
        %p1683 = scmp.eq.s32.totalorder %s23, 1
        // Predicated region
        $region53: #{down_block_bn_forward.1} parent=39 // pred_check
          %p1684 = pneg %p1683
        $region54: #{down_block_bn_forward.1} parent=39 // pred_check_branch
          %1686 = sbr.rel (%p1684) target = $region56
        $region55: #{down_block_bn_forward.1} parent=39 // pred_region
          %s1687 = scalar_lea.vmem [#allocation2], %s258
          %v1688 = vld [vmem:[%s1687] sm:$0xff]
          %v1689 = vld [vmem:[%s1687 + $0x8] sm:$0xff]
          %v1690 = vld [vmem:[%s1687 + $0x10] sm:$0xff]
          %v1691 = vld [vmem:[%s1687 + $0x18] sm:$0xff]
          %v1692 = vld [vmem:[%s1687 + $0x20] sm:$0xff]
          %v1693 = vld [vmem:[%s1687 + $0x28] sm:$0xff]
          %v1694 = vld [vmem:[%s1687 + $0x30] sm:$0xff]
          %v1695 = vld [vmem:[%s1687 + $0x38] sm:$0xff]
          %v1696 = vld [vmem:[%s1687 + $0x40] sm:$0xff]
          %v1697 = vld [vmem:[%s1687 + $0x48] sm:$0xff]
          %v1698 = vld [vmem:[%s1687 + $0x50] sm:$0xff]
          %v1699 = vld [vmem:[%s1687 + $0x58] sm:$0xff]
          %v1700 = vld [vmem:[%s1687 + $0x60] sm:$0xff]
          %v1701 = vld [vmem:[%s1687 + $0x68] sm:$0xff]
          %v1702 = vld [vmem:[%s1687 + $0x70] sm:$0xff]
          %v1703 = vld [vmem:[%s1687 + $0x78] sm:$0xff]
          %v1704 = vld [vmem:[%s1687 + $0x80] sm:$0xff]
          %v1705 = vld [vmem:[%s1687 + $0x88] sm:$0xff]
          %v1706 = vld [vmem:[%s1687 + $0x90] sm:$0xff]
          %v1707 = vld [vmem:[%s1687 + $0x98] sm:$0xff]
          %v1708 = vld [vmem:[%s1687 + $0xa0] sm:$0xff]
          %v1709 = vld [vmem:[%s1687 + $0xa8] sm:$0xff]
          %v1710 = vld [vmem:[%s1687 + $0xb0] sm:$0xff]
          %v1711 = vld [vmem:[%s1687 + $0xb8] sm:$0xff]
          %v1712 = vld [vmem:[%s1687 + $0xc0] sm:$0xff]
          %v1713 = vld [vmem:[%s1687 + $0xc8] sm:$0xff]
          %v1714 = vld [vmem:[%s1687 + $0xd0] sm:$0xff]
          %v1715 = vld [vmem:[%s1687 + $0xd8] sm:$0xff]
          %v1716 = vld [vmem:[%s1687 + $0xe0] sm:$0xff]
          %v1717 = vld [vmem:[%s1687 + $0xe8] sm:$0xff]
          %v1718 = vld [vmem:[%s1687 + $0xf0] sm:$0xff]
          %v1719 = vld [vmem:[%s1687 + $0xf8] sm:$0xff]
          %v1720 = vld [vmem:[%s1687 + $0x100] sm:$0xff]
          %v1721 = vld [vmem:[%s1687 + $0x108] sm:$0xff]
          %v1722 = vld [vmem:[%s1687 + $0x110] sm:$0xff]
          %v1723 = vld [vmem:[%s1687 + $0x118] sm:$0xff]
          %v1724 = vld [vmem:[%s1687 + $0x120] sm:$0xff]
          %v1725 = vld [vmem:[%s1687 + $0x128] sm:$0xff]
          %v1726 = vld [vmem:[%s1687 + $0x130] sm:$0xff]
          %v1727 = vld [vmem:[%s1687 + $0x138] sm:$0xff]
          %v1728 = vld [vmem:[%s1687 + $0x140] sm:$0xff]
          %v1729 = vld [vmem:[%s1687 + $0x148] sm:$0xff]
          %v1730 = vld [vmem:[%s1687 + $0x150] sm:$0xff]
          %v1731 = vld [vmem:[%s1687 + $0x158] sm:$0xff]
          %v1732 = vld [vmem:[%s1687 + $0x160] sm:$0xff]
          %v1733 = vld [vmem:[%s1687 + $0x168] sm:$0xff]
          %v1734 = vld [vmem:[%s1687 + $0x170] sm:$0xff]
          %v1735 = vld [vmem:[%s1687 + $0x178] sm:$0xff]
          %v1736 = vld [vmem:[%s1687 + $0x180] sm:$0xff]
          %v1737 = vld [vmem:[%s1687 + $0x188] sm:$0xff]
          %v1738 = vld [vmem:[%s1687 + $0x190] sm:$0xff]
          %v1739 = vld [vmem:[%s1687 + $0x198] sm:$0xff]
          %v1740 = vld [vmem:[%s1687 + $0x1a0] sm:$0xff]
          %v1741 = vld [vmem:[%s1687 + $0x1a8] sm:$0xff]
          %v1742 = vld [vmem:[%s1687 + $0x1b0] sm:$0xff]
          %v1743 = vld [vmem:[%s1687 + $0x1b8] sm:$0xff]
          %v1744 = vld [vmem:[%s1687 + $0x1c0] sm:$0xff]
          %v1745 = vld [vmem:[%s1687 + $0x1c8] sm:$0xff]
          %v1746 = vld [vmem:[%s1687 + $0x1d0] sm:$0xff]
          %v1747 = vld [vmem:[%s1687 + $0x1d8] sm:$0xff]
          %v1748 = vld [vmem:[%s1687 + $0x1e0] sm:$0xff]
          %v1749 = vld [vmem:[%s1687 + $0x1e8] sm:$0xff]
          %v1750 = vld [vmem:[%s1687 + $0x1f0] sm:$0xff]
          %v1751 = vld [vmem:[%s1687 + $0x1f8] sm:$0xff]
          %v1752 = vld [vmem:[#allocation3] sm:$0x1]
          %v1754 = vperm.slane %v1752, 0
          %v1756 = vmul.f32 %v1688, %v1754
          %v1757 = vmul.f32 %v1689, %v1754
          %v1758 = vmul.f32 %v1690, %v1754
          %v1759 = vmul.f32 %v1691, %v1754
          %v1760 = vmul.f32 %v1692, %v1754
          %v1761 = vmul.f32 %v1693, %v1754
          %v1762 = vmul.f32 %v1694, %v1754
          %v1763 = vmul.f32 %v1695, %v1754
          %v1764 = vmul.f32 %v1696, %v1754
          %v1765 = vmul.f32 %v1697, %v1754
          %v1766 = vmul.f32 %v1698, %v1754
          %v1767 = vmul.f32 %v1699, %v1754
          %v1768 = vmul.f32 %v1700, %v1754
          %v1769 = vmul.f32 %v1701, %v1754
          %v1770 = vmul.f32 %v1702, %v1754
          %v1771 = vmul.f32 %v1703, %v1754
          %v1772 = vmul.f32 %v1704, %v1754
          %v1773 = vmul.f32 %v1705, %v1754
          %v1774 = vmul.f32 %v1706, %v1754
          %v1775 = vmul.f32 %v1707, %v1754
          %v1776 = vmul.f32 %v1708, %v1754
          %v1777 = vmul.f32 %v1709, %v1754
          %v1778 = vmul.f32 %v1710, %v1754
          %v1779 = vmul.f32 %v1711, %v1754
          %v1780 = vmul.f32 %v1712, %v1754
          %v1781 = vmul.f32 %v1713, %v1754
          %v1782 = vmul.f32 %v1714, %v1754
          %v1783 = vmul.f32 %v1715, %v1754
          %v1784 = vmul.f32 %v1716, %v1754
          %v1785 = vmul.f32 %v1717, %v1754
          %v1786 = vmul.f32 %v1718, %v1754
          %v1787 = vmul.f32 %v1719, %v1754
          %v1788 = vmul.f32 %v1720, %v1754
          %v1789 = vmul.f32 %v1721, %v1754
          %v1790 = vmul.f32 %v1722, %v1754
          %v1791 = vmul.f32 %v1723, %v1754
          %v1792 = vmul.f32 %v1724, %v1754
          %v1793 = vmul.f32 %v1725, %v1754
          %v1794 = vmul.f32 %v1726, %v1754
          %v1795 = vmul.f32 %v1727, %v1754
          %v1796 = vmul.f32 %v1728, %v1754
          %v1797 = vmul.f32 %v1729, %v1754
          %v1798 = vmul.f32 %v1730, %v1754
          %v1799 = vmul.f32 %v1731, %v1754
          %v1800 = vmul.f32 %v1732, %v1754
          %v1801 = vmul.f32 %v1733, %v1754
          %v1802 = vmul.f32 %v1734, %v1754
          %v1803 = vmul.f32 %v1735, %v1754
          %v1804 = vmul.f32 %v1736, %v1754
          %v1805 = vmul.f32 %v1737, %v1754
          %v1806 = vmul.f32 %v1738, %v1754
          %v1807 = vmul.f32 %v1739, %v1754
          %v1808 = vmul.f32 %v1740, %v1754
          %v1809 = vmul.f32 %v1741, %v1754
          %v1810 = vmul.f32 %v1742, %v1754
          %v1811 = vmul.f32 %v1743, %v1754
          %v1812 = vmul.f32 %v1744, %v1754
          %v1813 = vmul.f32 %v1745, %v1754
          %v1814 = vmul.f32 %v1746, %v1754
          %v1815 = vmul.f32 %v1747, %v1754
          %v1816 = vmul.f32 %v1748, %v1754
          %v1817 = vmul.f32 %v1749, %v1754
          %v1818 = vmul.f32 %v1750, %v1754
          %v1819 = vmul.f32 %v1751, %v1754
          %v1820 = vld [vmem:[#allocation4] sm:$0x1]
          %v1822 = vperm.slane %v1820, 0
          %v1824 = vadd.f32 %v1756, %v1822
          %v1825 = vadd.f32 %v1757, %v1822
          %v1826 = vadd.f32 %v1758, %v1822
          %v1827 = vadd.f32 %v1759, %v1822
          %v1828 = vadd.f32 %v1760, %v1822
          %v1829 = vadd.f32 %v1761, %v1822
          %v1830 = vadd.f32 %v1762, %v1822
          %v1831 = vadd.f32 %v1763, %v1822
          %v1832 = vadd.f32 %v1764, %v1822
          %v1833 = vadd.f32 %v1765, %v1822
          %v1834 = vadd.f32 %v1766, %v1822
          %v1835 = vadd.f32 %v1767, %v1822
          %v1836 = vadd.f32 %v1768, %v1822
          %v1837 = vadd.f32 %v1769, %v1822
          %v1838 = vadd.f32 %v1770, %v1822
          %v1839 = vadd.f32 %v1771, %v1822
          %v1840 = vadd.f32 %v1772, %v1822
          %v1841 = vadd.f32 %v1773, %v1822
          %v1842 = vadd.f32 %v1774, %v1822
          %v1843 = vadd.f32 %v1775, %v1822
          %v1844 = vadd.f32 %v1776, %v1822
          %v1845 = vadd.f32 %v1777, %v1822
          %v1846 = vadd.f32 %v1778, %v1822
          %v1847 = vadd.f32 %v1779, %v1822
          %v1848 = vadd.f32 %v1780, %v1822
          %v1849 = vadd.f32 %v1781, %v1822
          %v1850 = vadd.f32 %v1782, %v1822
          %v1851 = vadd.f32 %v1783, %v1822
          %v1852 = vadd.f32 %v1784, %v1822
          %v1853 = vadd.f32 %v1785, %v1822
          %v1854 = vadd.f32 %v1786, %v1822
          %v1855 = vadd.f32 %v1787, %v1822
          %v1856 = vadd.f32 %v1788, %v1822
          %v1857 = vadd.f32 %v1789, %v1822
          %v1858 = vadd.f32 %v1790, %v1822
          %v1859 = vadd.f32 %v1791, %v1822
          %v1860 = vadd.f32 %v1792, %v1822
          %v1861 = vadd.f32 %v1793, %v1822
          %v1862 = vadd.f32 %v1794, %v1822
          %v1863 = vadd.f32 %v1795, %v1822
          %v1864 = vadd.f32 %v1796, %v1822
          %v1865 = vadd.f32 %v1797, %v1822
          %v1866 = vadd.f32 %v1798, %v1822
          %v1867 = vadd.f32 %v1799, %v1822
          %v1868 = vadd.f32 %v1800, %v1822
          %v1869 = vadd.f32 %v1801, %v1822
          %v1870 = vadd.f32 %v1802, %v1822
          %v1871 = vadd.f32 %v1803, %v1822
          %v1872 = vadd.f32 %v1804, %v1822
          %v1873 = vadd.f32 %v1805, %v1822
          %v1874 = vadd.f32 %v1806, %v1822
          %v1875 = vadd.f32 %v1807, %v1822
          %v1876 = vadd.f32 %v1808, %v1822
          %v1877 = vadd.f32 %v1809, %v1822
          %v1878 = vadd.f32 %v1810, %v1822
          %v1879 = vadd.f32 %v1811, %v1822
          %v1880 = vadd.f32 %v1812, %v1822
          %v1881 = vadd.f32 %v1813, %v1822
          %v1882 = vadd.f32 %v1814, %v1822
          %v1883 = vadd.f32 %v1815, %v1822
          %v1884 = vadd.f32 %v1816, %v1822
          %v1885 = vadd.f32 %v1817, %v1822
          %v1886 = vadd.f32 %v1818, %v1822
          %v1887 = vadd.f32 %v1819, %v1822
          %vm1888 = vcmp.ge.f32.partialorder %v1824, 0.0
          %vm1889 = vcmp.ge.f32.partialorder %v1825, 0.0
          %vm1890 = vcmp.ge.f32.partialorder %v1826, 0.0
          %vm1891 = vcmp.ge.f32.partialorder %v1827, 0.0
          %vm1892 = vcmp.ge.f32.partialorder %v1828, 0.0
          %vm1893 = vcmp.ge.f32.partialorder %v1829, 0.0
          %vm1894 = vcmp.ge.f32.partialorder %v1830, 0.0
          %vm1895 = vcmp.ge.f32.partialorder %v1831, 0.0
          %vm1896 = vcmp.ge.f32.partialorder %v1832, 0.0
          %vm1897 = vcmp.ge.f32.partialorder %v1833, 0.0
          %vm1898 = vcmp.ge.f32.partialorder %v1834, 0.0
          %vm1899 = vcmp.ge.f32.partialorder %v1835, 0.0
          %vm1900 = vcmp.ge.f32.partialorder %v1836, 0.0
          %vm1901 = vcmp.ge.f32.partialorder %v1837, 0.0
          %vm1902 = vcmp.ge.f32.partialorder %v1838, 0.0
          %vm1903 = vcmp.ge.f32.partialorder %v1839, 0.0
          %vm1904 = vcmp.ge.f32.partialorder %v1840, 0.0
          %vm1905 = vcmp.ge.f32.partialorder %v1841, 0.0
          %vm1906 = vcmp.ge.f32.partialorder %v1842, 0.0
          %vm1907 = vcmp.ge.f32.partialorder %v1843, 0.0
          %vm1908 = vcmp.ge.f32.partialorder %v1844, 0.0
          %vm1909 = vcmp.ge.f32.partialorder %v1845, 0.0
          %vm1910 = vcmp.ge.f32.partialorder %v1846, 0.0
          %vm1911 = vcmp.ge.f32.partialorder %v1847, 0.0
          %vm1912 = vcmp.ge.f32.partialorder %v1848, 0.0
          %vm1913 = vcmp.ge.f32.partialorder %v1849, 0.0
          %vm1914 = vcmp.ge.f32.partialorder %v1850, 0.0
          %vm1915 = vcmp.ge.f32.partialorder %v1851, 0.0
          %vm1916 = vcmp.ge.f32.partialorder %v1852, 0.0
          %vm1917 = vcmp.ge.f32.partialorder %v1853, 0.0
          %vm1918 = vcmp.ge.f32.partialorder %v1854, 0.0
          %vm1919 = vcmp.ge.f32.partialorder %v1855, 0.0
          %vm1920 = vcmp.ge.f32.partialorder %v1856, 0.0
          %vm1921 = vcmp.ge.f32.partialorder %v1857, 0.0
          %vm1922 = vcmp.ge.f32.partialorder %v1858, 0.0
          %vm1923 = vcmp.ge.f32.partialorder %v1859, 0.0
          %vm1924 = vcmp.ge.f32.partialorder %v1860, 0.0
          %vm1925 = vcmp.ge.f32.partialorder %v1861, 0.0
          %vm1926 = vcmp.ge.f32.partialorder %v1862, 0.0
          %vm1927 = vcmp.ge.f32.partialorder %v1863, 0.0
          %vm1928 = vcmp.ge.f32.partialorder %v1864, 0.0
          %vm1929 = vcmp.ge.f32.partialorder %v1865, 0.0
          %vm1930 = vcmp.ge.f32.partialorder %v1866, 0.0
          %vm1931 = vcmp.ge.f32.partialorder %v1867, 0.0
          %vm1932 = vcmp.ge.f32.partialorder %v1868, 0.0
          %vm1933 = vcmp.ge.f32.partialorder %v1869, 0.0
          %vm1934 = vcmp.ge.f32.partialorder %v1870, 0.0
          %vm1935 = vcmp.ge.f32.partialorder %v1871, 0.0
          %vm1936 = vcmp.ge.f32.partialorder %v1872, 0.0
          %vm1937 = vcmp.ge.f32.partialorder %v1873, 0.0
          %vm1938 = vcmp.ge.f32.partialorder %v1874, 0.0
          %vm1939 = vcmp.ge.f32.partialorder %v1875, 0.0
          %vm1940 = vcmp.ge.f32.partialorder %v1876, 0.0
          %vm1941 = vcmp.ge.f32.partialorder %v1877, 0.0
          %vm1942 = vcmp.ge.f32.partialorder %v1878, 0.0
          %vm1943 = vcmp.ge.f32.partialorder %v1879, 0.0
          %vm1944 = vcmp.ge.f32.partialorder %v1880, 0.0
          %vm1945 = vcmp.ge.f32.partialorder %v1881, 0.0
          %vm1946 = vcmp.ge.f32.partialorder %v1882, 0.0
          %vm1947 = vcmp.ge.f32.partialorder %v1883, 0.0
          %vm1948 = vcmp.ge.f32.partialorder %v1884, 0.0
          %vm1949 = vcmp.ge.f32.partialorder %v1885, 0.0
          %vm1950 = vcmp.ge.f32.partialorder %v1886, 0.0
          %vm1951 = vcmp.ge.f32.partialorder %v1887, 0.0
          %v1952 = vmul.f32 %v1824, 0.01
          %v1953 = vmul.f32 %v1825, 0.01
          %v1954 = vmul.f32 %v1826, 0.01
          %v1955 = vmul.f32 %v1827, 0.01
          %v1956 = vmul.f32 %v1828, 0.01
          %v1957 = vmul.f32 %v1829, 0.01
          %v1958 = vmul.f32 %v1830, 0.01
          %v1959 = vmul.f32 %v1831, 0.01
          %v1960 = vmul.f32 %v1832, 0.01
          %v1961 = vmul.f32 %v1833, 0.01
          %v1962 = vmul.f32 %v1834, 0.01
          %v1963 = vmul.f32 %v1835, 0.01
          %v1964 = vmul.f32 %v1836, 0.01
          %v1965 = vmul.f32 %v1837, 0.01
          %v1966 = vmul.f32 %v1838, 0.01
          %v1967 = vmul.f32 %v1839, 0.01
          %v1968 = vmul.f32 %v1840, 0.01
          %v1969 = vmul.f32 %v1841, 0.01
          %v1970 = vmul.f32 %v1842, 0.01
          %v1971 = vmul.f32 %v1843, 0.01
          %v1972 = vmul.f32 %v1844, 0.01
          %v1973 = vmul.f32 %v1845, 0.01
          %v1974 = vmul.f32 %v1846, 0.01
          %v1975 = vmul.f32 %v1847, 0.01
          %v1976 = vmul.f32 %v1848, 0.01
          %v1977 = vmul.f32 %v1849, 0.01
          %v1978 = vmul.f32 %v1850, 0.01
          %v1979 = vmul.f32 %v1851, 0.01
          %v1980 = vmul.f32 %v1852, 0.01
          %v1981 = vmul.f32 %v1853, 0.01
          %v1982 = vmul.f32 %v1854, 0.01
          %v1983 = vmul.f32 %v1855, 0.01
          %v1984 = vmul.f32 %v1856, 0.01
          %v1985 = vmul.f32 %v1857, 0.01
          %v1986 = vmul.f32 %v1858, 0.01
          %v1987 = vmul.f32 %v1859, 0.01
          %v1988 = vmul.f32 %v1860, 0.01
          %v1989 = vmul.f32 %v1861, 0.01
          %v1990 = vmul.f32 %v1862, 0.01
          %v1991 = vmul.f32 %v1863, 0.01
          %v1992 = vmul.f32 %v1864, 0.01
          %v1993 = vmul.f32 %v1865, 0.01
          %v1994 = vmul.f32 %v1866, 0.01
          %v1995 = vmul.f32 %v1867, 0.01
          %v1996 = vmul.f32 %v1868, 0.01
          %v1997 = vmul.f32 %v1869, 0.01
          %v1998 = vmul.f32 %v1870, 0.01
          %v1999 = vmul.f32 %v1871, 0.01
          %v2000 = vmul.f32 %v1872, 0.01
          %v2001 = vmul.f32 %v1873, 0.01
          %v2002 = vmul.f32 %v1874, 0.01
          %v2003 = vmul.f32 %v1875, 0.01
          %v2004 = vmul.f32 %v1876, 0.01
          %v2005 = vmul.f32 %v1877, 0.01
          %v2006 = vmul.f32 %v1878, 0.01
          %v2007 = vmul.f32 %v1879, 0.01
          %v2008 = vmul.f32 %v1880, 0.01
          %v2009 = vmul.f32 %v1881, 0.01
          %v2010 = vmul.f32 %v1882, 0.01
          %v2011 = vmul.f32 %v1883, 0.01
          %v2012 = vmul.f32 %v1884, 0.01
          %v2013 = vmul.f32 %v1885, 0.01
          %v2014 = vmul.f32 %v1886, 0.01
          %v2015 = vmul.f32 %v1887, 0.01
          %v2016 = vsel %vm1888, %v1824, %v1952
          %v2017 = vsel %vm1889, %v1825, %v1953
          %v2018 = vsel %vm1890, %v1826, %v1954
          %v2019 = vsel %vm1891, %v1827, %v1955
          %v2020 = vsel %vm1892, %v1828, %v1956
          %v2021 = vsel %vm1893, %v1829, %v1957
          %v2022 = vsel %vm1894, %v1830, %v1958
          %v2023 = vsel %vm1895, %v1831, %v1959
          %v2024 = vsel %vm1896, %v1832, %v1960
          %v2025 = vsel %vm1897, %v1833, %v1961
          %v2026 = vsel %vm1898, %v1834, %v1962
          %v2027 = vsel %vm1899, %v1835, %v1963
          %v2028 = vsel %vm1900, %v1836, %v1964
          %v2029 = vsel %vm1901, %v1837, %v1965
          %v2030 = vsel %vm1902, %v1838, %v1966
          %v2031 = vsel %vm1903, %v1839, %v1967
          %v2032 = vsel %vm1904, %v1840, %v1968
          %v2033 = vsel %vm1905, %v1841, %v1969
          %v2034 = vsel %vm1906, %v1842, %v1970
          %v2035 = vsel %vm1907, %v1843, %v1971
          %v2036 = vsel %vm1908, %v1844, %v1972
          %v2037 = vsel %vm1909, %v1845, %v1973
          %v2038 = vsel %vm1910, %v1846, %v1974
          %v2039 = vsel %vm1911, %v1847, %v1975
          %v2040 = vsel %vm1912, %v1848, %v1976
          %v2041 = vsel %vm1913, %v1849, %v1977
          %v2042 = vsel %vm1914, %v1850, %v1978
          %v2043 = vsel %vm1915, %v1851, %v1979
          %v2044 = vsel %vm1916, %v1852, %v1980
          %v2045 = vsel %vm1917, %v1853, %v1981
          %v2046 = vsel %vm1918, %v1854, %v1982
          %v2047 = vsel %vm1919, %v1855, %v1983
          %v2048 = vsel %vm1920, %v1856, %v1984
          %v2049 = vsel %vm1921, %v1857, %v1985
          %v2050 = vsel %vm1922, %v1858, %v1986
          %v2051 = vsel %vm1923, %v1859, %v1987
          %v2052 = vsel %vm1924, %v1860, %v1988
          %v2053 = vsel %vm1925, %v1861, %v1989
          %v2054 = vsel %vm1926, %v1862, %v1990
          %v2055 = vsel %vm1927, %v1863, %v1991
          %v2056 = vsel %vm1928, %v1864, %v1992
          %v2057 = vsel %vm1929, %v1865, %v1993
          %v2058 = vsel %vm1930, %v1866, %v1994
          %v2059 = vsel %vm1931, %v1867, %v1995
          %v2060 = vsel %vm1932, %v1868, %v1996
          %v2061 = vsel %vm1933, %v1869, %v1997
          %v2062 = vsel %vm1934, %v1870, %v1998
          %v2063 = vsel %vm1935, %v1871, %v1999
          %v2064 = vsel %vm1936, %v1872, %v2000
          %v2065 = vsel %vm1937, %v1873, %v2001
          %v2066 = vsel %vm1938, %v1874, %v2002
          %v2067 = vsel %vm1939, %v1875, %v2003
          %v2068 = vsel %vm1940, %v1876, %v2004
          %v2069 = vsel %vm1941, %v1877, %v2005
          %v2070 = vsel %vm1942, %v1878, %v2006
          %v2071 = vsel %vm1943, %v1879, %v2007
          %v2072 = vsel %vm1944, %v1880, %v2008
          %v2073 = vsel %vm1945, %v1881, %v2009
          %v2074 = vsel %vm1946, %v1882, %v2010
          %v2075 = vsel %vm1947, %v1883, %v2011
          %v2076 = vsel %vm1948, %v1884, %v2012
          %v2077 = vsel %vm1949, %v1885, %v2013
          %v2078 = vsel %vm1950, %v1886, %v2014
          %v2079 = vsel %vm1951, %v1887, %v2015
          %2080 = vst [vmem:[%s244] sm:$0xff] %v2016
          %2081 = vst [vmem:[%s244 + $0x8] sm:$0xff] %v2017
          %2082 = vst [vmem:[%s244 + $0x10] sm:$0xff] %v2018
          %2083 = vst [vmem:[%s244 + $0x18] sm:$0xff] %v2019
          %2084 = vst [vmem:[%s244 + $0x20] sm:$0xff] %v2020
          %2085 = vst [vmem:[%s244 + $0x28] sm:$0xff] %v2021
          %2086 = vst [vmem:[%s244 + $0x30] sm:$0xff] %v2022
          %2087 = vst [vmem:[%s244 + $0x38] sm:$0xff] %v2023
          %2088 = vst [vmem:[%s244 + $0x40] sm:$0xff] %v2024
          %2089 = vst [vmem:[%s244 + $0x48] sm:$0xff] %v2025
          %2090 = vst [vmem:[%s244 + $0x50] sm:$0xff] %v2026
          %2091 = vst [vmem:[%s244 + $0x58] sm:$0xff] %v2027
          %2092 = vst [vmem:[%s244 + $0x60] sm:$0xff] %v2028
          %2093 = vst [vmem:[%s244 + $0x68] sm:$0xff] %v2029
          %2094 = vst [vmem:[%s244 + $0x70] sm:$0xff] %v2030
          %2095 = vst [vmem:[%s244 + $0x78] sm:$0xff] %v2031
          %2096 = vst [vmem:[%s244 + $0x80] sm:$0xff] %v2032
          %2097 = vst [vmem:[%s244 + $0x88] sm:$0xff] %v2033
          %2098 = vst [vmem:[%s244 + $0x90] sm:$0xff] %v2034
          %2099 = vst [vmem:[%s244 + $0x98] sm:$0xff] %v2035
          %2100 = vst [vmem:[%s244 + $0xa0] sm:$0xff] %v2036
          %2101 = vst [vmem:[%s244 + $0xa8] sm:$0xff] %v2037
          %2102 = vst [vmem:[%s244 + $0xb0] sm:$0xff] %v2038
          %2103 = vst [vmem:[%s244 + $0xb8] sm:$0xff] %v2039
          %2104 = vst [vmem:[%s244 + $0xc0] sm:$0xff] %v2040
          %2105 = vst [vmem:[%s244 + $0xc8] sm:$0xff] %v2041
          %2106 = vst [vmem:[%s244 + $0xd0] sm:$0xff] %v2042
          %2107 = vst [vmem:[%s244 + $0xd8] sm:$0xff] %v2043
          %2108 = vst [vmem:[%s244 + $0xe0] sm:$0xff] %v2044
          %2109 = vst [vmem:[%s244 + $0xe8] sm:$0xff] %v2045
          %2110 = vst [vmem:[%s244 + $0xf0] sm:$0xff] %v2046
          %2111 = vst [vmem:[%s244 + $0xf8] sm:$0xff] %v2047
          %2112 = vst [vmem:[%s244 + $0x100] sm:$0xff] %v2048
          %2113 = vst [vmem:[%s244 + $0x108] sm:$0xff] %v2049
          %2114 = vst [vmem:[%s244 + $0x110] sm:$0xff] %v2050
          %2115 = vst [vmem:[%s244 + $0x118] sm:$0xff] %v2051
          %2116 = vst [vmem:[%s244 + $0x120] sm:$0xff] %v2052
          %2117 = vst [vmem:[%s244 + $0x128] sm:$0xff] %v2053
          %2118 = vst [vmem:[%s244 + $0x130] sm:$0xff] %v2054
          %2119 = vst [vmem:[%s244 + $0x138] sm:$0xff] %v2055
          %2120 = vst [vmem:[%s244 + $0x140] sm:$0xff] %v2056
          %2121 = vst [vmem:[%s244 + $0x148] sm:$0xff] %v2057
          %2122 = vst [vmem:[%s244 + $0x150] sm:$0xff] %v2058
          %2123 = vst [vmem:[%s244 + $0x158] sm:$0xff] %v2059
          %2124 = vst [vmem:[%s244 + $0x160] sm:$0xff] %v2060
          %2125 = vst [vmem:[%s244 + $0x168] sm:$0xff] %v2061
          %2126 = vst [vmem:[%s244 + $0x170] sm:$0xff] %v2062
          %2127 = vst [vmem:[%s244 + $0x178] sm:$0xff] %v2063
          %2128 = vst [vmem:[%s244 + $0x180] sm:$0xff] %v2064
          %2129 = vst [vmem:[%s244 + $0x188] sm:$0xff] %v2065
          %2130 = vst [vmem:[%s244 + $0x190] sm:$0xff] %v2066
          %2131 = vst [vmem:[%s244 + $0x198] sm:$0xff] %v2067
          %2132 = vst [vmem:[%s244 + $0x1a0] sm:$0xff] %v2068
          %2133 = vst [vmem:[%s244 + $0x1a8] sm:$0xff] %v2069
          %2134 = vst [vmem:[%s244 + $0x1b0] sm:$0xff] %v2070
          %2135 = vst [vmem:[%s244 + $0x1b8] sm:$0xff] %v2071
          %2136 = vst [vmem:[%s244 + $0x1c0] sm:$0xff] %v2072
          %2137 = vst [vmem:[%s244 + $0x1c8] sm:$0xff] %v2073
          %2138 = vst [vmem:[%s244 + $0x1d0] sm:$0xff] %v2074
          %2139 = vst [vmem:[%s244 + $0x1d8] sm:$0xff] %v2075
          %2140 = vst [vmem:[%s244 + $0x1e0] sm:$0xff] %v2076
          %2141 = vst [vmem:[%s244 + $0x1e8] sm:$0xff] %v2077
          %2142 = vst [vmem:[%s244 + $0x1f0] sm:$0xff] %v2078
          %2143 = vst [vmem:[%s244 + $0x1f8] sm:$0xff] %v2079
        $region56: #{down_block_bn_forward.1} parent=39 // pred_fallthru
          _
        %s2144 = sand.u32 %s155, 1
        %s2145 = scalar_lea.sflag [#allocation6], %s2144
        %s2146 = sand.u32 %s155, 1
        %s2147 = smul.addr %s2146, 512
        %s2148 = scalar_lea.vmem [#allocation5], %s2147
        // Predicated region
        $region57: #{down_block_bn_forward.1} parent=39 // pred_check
          %p2149 = pneg %p165
        $region58: #{down_block_bn_forward.1} parent=39 // pred_check_branch
          %2151 = sbr.rel (%p2149) target = $region60
        $region59: #{down_block_bn_forward.1} parent=39 // pred_region
          %s2152 = smul.u32 %s24, %s23
          %s2153 = smul.u32 64, %s2152
          %2155 = vsyncadd %s2145, 0
          %s2156 = smul.addr %s2153, 8
          %s2157 = scalar_lea.hbm %s5, %s2156
          %s2158 = sshll.u32 %s2148, 4
          %s2159 = int_to_ptr.vmem [resolvable:$true] %s2158
          %s2160 = sshll.u32 %s2157, 4
          %s2161 = int_to_ptr.hbm [resolvable:$true] %s2160
          %2166 = dma.vmem_to_hbm [thread:$0]  %s2159, 8192, %s2161, %s2145, 128, 128, 8
        $region60: #{down_block_bn_forward.1} parent=39 // pred_fallthru
          _
      $region40: #{down_block_bn_forward.1} parent=5 // pred_fallthru
        _
      %p2167 = scmp.le.s32.totalorder 2, %s14
      // Predicated region
      $region61: #{down_block_bn_forward.1} parent=5 // pred_check
        %p2168 = pneg %p2167
      $region62: #{down_block_bn_forward.1} parent=5 // pred_check_branch
        %2170 = sbr.rel (%p2168) target = $region64
      $region63: #{down_block_bn_forward.1} parent=5 // pred_region
        %s2171 = ssub.s32 %s14, 2
        // Predicated region
        $region65: #{down_block_bn_forward.1} parent=63 // pred_check
          %p2172 = pneg %p171
        $region66: #{down_block_bn_forward.1} parent=63 // pred_check_branch
          %2174 = sbr.rel (%p2172) target = $region68
        $region67: #{down_block_bn_forward.1} parent=63 // pred_region
          %s2175 = sand.u32 %s156, 1
          %s2176 = scalar_lea.sflag [#allocation6], %s2175
          %s2177 = sand.u32 %s156, 1
          %s2178 = smul.addr %s2177, 512
          %s2179 = scalar_lea.vmem [#allocation5], %s2178
          %2181 = dma.done %s2176, 8192
        $region68: #{down_block_bn_forward.1} parent=63 // pred_fallthru
          _
      $region64: #{down_block_bn_forward.1} parent=5 // pred_fallthru
        _
    $region6: #{down_block_bn_forward.1} parent=1 // loop_footer
      %s18 = sadd.s32 1, %s14
    $region7: #{down_block_bn_forward.1} parent=1 // loop_footer_branch
      %13 = sbr.rel target = $region3
    $region8: #{down_block_bn_forward.1} parent=1 // loop_exit
      _
    %2182 = vsyncpa [#allocation6], 1
    %s2183 = scalar_lea.sflag [#allocation6], 1
    %2184 = vsyncpa %s2183, 1

</llo_original>
